<compile_context>
chip_gen: v7x
topology: tpu7x:2x2x1
jax: 0.10.0
libtpu: 0.0.40
codegen_flags: <defaults>
</compile_context>

<pallas_src>
import numpy as np
import jax
import jax.numpy as jnp
from jax import lax
from jax.experimental import pallas as pl
from jax.experimental.pallas import tpu as pltpu

# Hyperparameters from modelTrain.py (vocab_size there is data-dependent; we
# pick a small synthetic vocabulary since this is a synthetic kernel).
EMBEDDING_SIZE = 3
N_HIDDEN = 5
NUM_CLASSES = 2
VOCAB_SIZE = 16

HP = 64             # padded hidden size per direction
HH = 2 * HP         # 128: combined [fwd | bwd] hidden width (one lane block)
GATES = 4 * HH      # 512: [i, f, g, o], each 128 lanes (fwd 0:64, bwd 64:128)
CP = 128            # padded class axis (lane-dense output store)


def bilstm_kernel(xp_ref,    # (seq, bp, GATES) bf16: precomputed x@W_ih,
                             #   fwd sub-blocks use x[t], bwd use x[seq-1-t]
                  b_ref,     # (1, GATES)  f32 : fused LSTM bias (kept f32)
                  whh_ref,   # (HH, GATES) bf16: block recurrent weights
                  wfc_ref,   # (HH, CP)    bf16: padded fc weight (transposed)
                  bfc_ref,   # (1, CP)     f32 : padded fc bias
                  out_ref):  # (bp, CP)    f32
    seq_len, bp, _ = xp_ref.shape
    whh = whh_ref[...]
    bias = b_ref[...]

    def step(t, carry):
        h, c = carry                                         # f32 (bp, HH)
        # One bf16 MXU push per step: fused fwd+bwd recurrence; f32 accumulate.
        gates = (xp_ref[t].astype(jnp.float32) + bias
                 + jnp.dot(h.astype(jnp.bfloat16), whh,
                           preferred_element_type=jnp.float32))
        # 128-lane-aligned gate blocks matching the [fwd | bwd] hidden layout.
        i = jax.nn.sigmoid(gates[:, 0 * HH:1 * HH])
        f = jax.nn.sigmoid(gates[:, 1 * HH:2 * HH])
        g = jnp.tanh(gates[:, 2 * HH:3 * HH])
        o = jax.nn.sigmoid(gates[:, 3 * HH:4 * HH])
        c_new = f * c + i * g
        h_new = o * jnp.tanh(c_new)
        return h_new, c_new

    h0 = jnp.zeros((bp, HH), jnp.float32)
    c0 = jnp.zeros((bp, HH), jnp.float32)
    # seq_len is static and small -> full unroll so LLO pipelines across steps.
    h_final, _ = lax.fori_loop(0, seq_len, step, (h0, c0), unroll=True)

    # fc(cat([h_n[0], h_n[1]])) as one lane-dense bf16 matmul, f32 accumulate.
    out_ref[...] = (jnp.dot(h_final.astype(jnp.bfloat16), wfc_ref[...],
                            preferred_element_type=jnp.float32)
                    + bfc_ref[...])


def init_params(key):
    ks = jax.random.split(key, 11)

    def u(k, shape, scale=0.1):
        return jax.random.uniform(k, shape, jnp.float32, -scale, scale)

    return {
        "emb":   u(ks[0], (VOCAB_SIZE, EMBEDDING_SIZE)),
        # PyTorch LSTM param shapes: weight_ih (4H, in), weight_hh (4H, H), biases (4H,)
        "wih_f": u(ks[1], (4 * N_HIDDEN, EMBEDDING_SIZE)),
        "whh_f": u(ks[2], (4 * N_HIDDEN, N_HIDDEN)),
        "bih_f": u(ks[3], (4 * N_HIDDEN,)),
        "bhh_f": u(ks[4], (4 * N_HIDDEN,)),
        "wih_b": u(ks[5], (4 * N_HIDDEN, EMBEDDING_SIZE)),
        "whh_b": u(ks[6], (4 * N_HIDDEN, N_HIDDEN)),
        "bih_b": u(ks[7], (4 * N_HIDDEN,)),
        "bhh_b": u(ks[8], (4 * N_HIDDEN,)),
        # nn.Linear(2H, C): weight (C, 2H), bias (C,)
        "wfc":   u(ks[9], (NUM_CLASSES, 2 * N_HIDDEN)),
        "bfc":   u(ks[10], (NUM_CLASSES,)),
    }


def pack_params(p):
    """Pad / lay out weights in the fused 64+64-lane-per-gate layout.

    Gate k (PyTorch order i,f,g,o) owns lanes [k*128, (k+1)*128); the fwd
    direction uses lanes [k*128, k*128+64) and the bwd direction uses lanes
    [k*128+64, (k+1)*128).  Padded rows / columns / bias lanes are exactly zero
    so padded hidden lanes stay 0 and never feed back into real lanes.
    """
    H, E, C = N_HIDDEN, EMBEDDING_SIZE, NUM_CLASSES
    wih_f_t, wih_b_t = p["wih_f"].T, p["wih_b"].T      # (E, 4H)
    whh_f_t, whh_b_t = p["whh_f"].T, p["whh_b"].T      # (H, 4H)
    bias_f = p["bih_f"] + p["bhh_f"]
    bias_b = p["bih_b"] + p["bhh_b"]

    w_in_f = jnp.zeros((E, GATES), jnp.float32)        # fwd sub-lanes only
    w_in_b = jnp.zeros((E, GATES), jnp.float32)        # bwd sub-lanes only
    whh = jnp.zeros((HH, GATES), jnp.float32)          # rows 0:HP fwd, HP:HH bwd
    b_cat = jnp.zeros((1, GATES), jnp.float32)
    for k in range(4):                                  # PyTorch gate order i,f,g,o
        cf = k * HH                                     # fwd sub-block start
        cb = k * HH + HP                                # bwd sub-block start
        w_in_f = w_in_f.at[:, cf:cf + H].set(wih_f_t[:, k * H:(k + 1) * H])
        w_in_b = w_in_b.at[:, cb:cb + H].set(wih_b_t[:, k * H:(k + 1) * H])
        whh = whh.at[0:H, cf:cf + H].set(whh_f_t[:, k * H:(k + 1) * H])
        whh = whh.at[HP:HP + H, cb:cb + H].set(whh_b_t[:, k * H:(k + 1) * H])
        b_cat = b_cat.at[0, cf:cf + H].set(bias_f[k * H:(k + 1) * H])
        b_cat = b_cat.at[0, cb:cb + H].set(bias_b[k * H:(k + 1) * H])

    wfc_t = p["wfc"].T                                  # (2H, C)
    wfc = jnp.zeros((HH, CP), jnp.float32)
    wfc = wfc.at[0:H, 0:C].set(wfc_t[0:H])              # multiplies h_fwd lanes
    wfc = wfc.at[HP:HP + H, 0:C].set(wfc_t[H:2 * H])    # multiplies h_bwd lanes
    bfc = jnp.zeros((1, CP), jnp.float32).at[0, 0:C].set(p["bfc"])

    return (w_in_f, w_in_b,
            whh.astype(jnp.bfloat16), b_cat,
            wfc.astype(jnp.bfloat16), bfc)


def bilstm_forward(ids, p):
    batch, _ = ids.shape
    # Embedding lookup as an XLA gather (no padded one-hot in VMEM).
    x = p["emb"][ids]                                   # (batch, seq, emb)
    x = jnp.transpose(x, (1, 0, 2))                     # (seq, batch, emb) time-major

    # Sublane-dense batch: pad to a multiple of 8 rows (rows are independent).
    bp = max(8, -(-batch // 8) * 8)
    if bp != batch:
        x = jnp.pad(x, ((0, 0), (0, bp - batch), (0, 0)))

    w_in_f, w_in_b, whh_bd, b_cat, wfc_pad, bfc_pad = pack_params(p)

    # Hoisted input projection for BOTH directions (bwd time reversal baked in)
    # without a concat copy of x; stored bf16, bias stays f32 and is added
    # in-kernel to bound rounding error.
    xp = (x @ w_in_f + x[::-1] @ w_in_b).astype(jnp.bfloat16)   # (seq, bp, GATES)

    out_pad = pl.pallas_call(
        bilstm_kernel,
        out_shape=jax.ShapeDtypeStruct((bp, CP), jnp.float32),
        in_specs=[pl.BlockSpec(memory_space=pltpu.MemorySpace.VMEM)] * 5,
        out_specs=pl.BlockSpec(memory_space=pltpu.MemorySpace.VMEM),
        compiler_params=pltpu.CompilerParams(vmem_limit_bytes=32 * 1024 * 1024),
    )(xp, b_cat, whh_bd, wfc_pad, bfc_pad)
    return out_pad[:batch, :NUM_CLASSES]


def bilstm_reference(ids, p):
    """Pure-JAX f32 reference matching the PyTorch forward semantics."""
    x = p["emb"][ids]                          # (batch, seq, emb)
    x = jnp.transpose(x, (1, 0, 2))            # (seq, batch, emb)
    batch = x.shape[1]

    def run(x_seq, wih, whh, bih, bhh):
        wih_t, whh_t, b = wih.T, whh.T, (bih + bhh)[None, :]

        def step(carry, x_t):
            h, c = carry
            gates = x_t @ wih_t + h @ whh_t + b
            i, f, g, o = jnp.split(gates, 4, axis=1)
            i, f, o = jax.nn.sigmoid(i), jax.nn.sigmoid(f), jax.nn.sigmoid(o)
            g = jnp.tanh(g)
            c = f * c + i * g
            h = o * jnp.tanh(c)
            return (h, c), h

        init = (jnp.zeros((batch, N_HIDDEN), jnp.float32),
                jnp.zeros((batch, N_HIDDEN), jnp.float32))
        (h, _), _ = lax.scan(step, init, x_seq)
        return h

    h_f = run(x, p["wih_f"], p["whh_f"], p["bih_f"], p["bhh_f"])
    h_b = run(x[::-1], p["wih_b"], p["whh_b"], p["bih_b"], p["bhh_b"])
    enc1 = jnp.concatenate([h_f, h_b], axis=1)
    return enc1 @ p["wfc"].T + p["bfc"]


if __name__ == "__main__":
    key = jax.random.PRNGKey(0)
    k_par, k_ids = jax.random.split(key)

    batch, seq_len = 2, 8
    params = init_params(k_par)
    ids = jax.random.randint(k_ids, (batch, seq_len), 0, VOCAB_SIZE, dtype=jnp.int32)

    out = bilstm_forward(ids, params)
    out = jax.block_until_ready(out)

    ref = bilstm_reference(ids, params)
    # bf16 MXU operands (whh / wfc / xp, f32 accumulation & gate math) ->
    # looser tolerance than a pure-f32 kernel.
    np.testing.assert_allclose(np.asarray(out), np.asarray(ref), rtol=2e-2, atol=2e-3)

    print("KERNEL_OK")
</pallas_src>

<mosaic_0001>
module attributes {stable_mosaic.version = 11 : i64} {
  func.func @bilstm_kernel(%arg0: memref<8x8x512xbf16, #tpu.memory_space<vmem>>, %arg1: memref<1x512xf32, #tpu.memory_space<vmem>>, %arg2: memref<128x512xbf16, #tpu.memory_space<vmem>>, %arg3: memref<128x128xbf16, #tpu.memory_space<vmem>>, %arg4: memref<1x128xf32, #tpu.memory_space<vmem>>, %arg5: memref<8x128xf32, #tpu.memory_space<vmem>>) attributes {dimension_semantics = [], scalar_prefetch = 0 : i64, scratch_operands = 0 : i64, tpu.core_type = #tpu.core_type<tc>} {
    %c0 = arith.constant 0 : index
    %c0_0 = arith.constant 0 : index
    %0 = vector.load %arg2[%c0, %c0_0] : memref<128x512xbf16, #tpu.memory_space<vmem>>, vector<128x512xbf16>
    %c0_1 = arith.constant 0 : index
    %c0_2 = arith.constant 0 : index
    %1 = vector.load %arg1[%c0_1, %c0_2] : memref<1x512xf32, #tpu.memory_space<vmem>>, vector<1x512xf32>
    %cst = arith.constant 0.000000e+00 : f32
    %2 = vector.broadcast %cst : f32 to vector<8x128xf32>
    %cst_3 = arith.constant 0.000000e+00 : f32
    %3 = vector.broadcast %cst_3 : f32 to vector<8x128xf32>
    %c0_i32 = arith.constant 0 : i32
    %4 = arith.index_cast %c0_i32 : i32 to index
    %c0_4 = arith.constant 0 : index
    %c0_5 = arith.constant 0 : index
    %5 = vector.load %arg0[%4, %c0_4, %c0_5] : memref<8x8x512xbf16, #tpu.memory_space<vmem>>, vector<1x8x512xbf16>
    %6 = vector.shape_cast %5 : vector<1x8x512xbf16> to vector<8x512xbf16>
    %7 = arith.extf %6 : vector<8x512xbf16> to vector<8x512xf32>
    %8 = vector.broadcast %1 : vector<1x512xf32> to vector<8x512xf32>
    %9 = arith.addf %7, %8 : vector<8x512xf32>
    %10 = arith.truncf %2 : vector<8x128xf32> to vector<8x128xbf16>
    %cst_6 = arith.constant dense<0.000000e+00> : vector<8x512xf32>
    %11 = tpu.matmul %10, %0, %cst_6 {dimension_numbers = #tpu.dot_dimension_numbers<[1], [0], [0], [1], [0, 0, 1, 1], [], []>} : vector<8x128xbf16>, vector<128x512xbf16>, vector<8x512xf32> -> vector<8x512xf32>
    %12 = arith.addf %9, %11 : vector<8x512xf32>
    %13 = vector.extract_strided_slice %12 {offsets = [0, 0], sizes = [8, 128], strides = [1, 1]} : vector<8x512xf32> to vector<8x128xf32>
    %14 = arith.negf %13 : vector<8x128xf32>
    %15 = math.exp %14 : vector<8x128xf32>
    %cst_7 = arith.constant 1.000000e+00 : f32
    %16 = vector.broadcast %cst_7 : f32 to vector<8x128xf32>
    %17 = arith.addf %16, %15 : vector<8x128xf32>
    %18 = arith.divf %16, %17 : vector<8x128xf32>
    %19 = vector.extract_strided_slice %12 {offsets = [0, 128], sizes = [8, 128], strides = [1, 1]} : vector<8x512xf32> to vector<8x128xf32>
    %20 = arith.negf %19 : vector<8x128xf32>
    %21 = math.exp %20 : vector<8x128xf32>
    %cst_8 = arith.constant 1.000000e+00 : f32
    %22 = vector.broadcast %cst_8 : f32 to vector<8x128xf32>
    %23 = arith.addf %22, %21 : vector<8x128xf32>
    %24 = arith.divf %22, %23 : vector<8x128xf32>
    %25 = vector.extract_strided_slice %12 {offsets = [0, 256], sizes = [8, 128], strides = [1, 1]} : vector<8x512xf32> to vector<8x128xf32>
    %26 = math.tanh %25 : vector<8x128xf32>
    %27 = vector.extract_strided_slice %12 {offsets = [0, 384], sizes = [8, 128], strides = [1, 1]} : vector<8x512xf32> to vector<8x128xf32>
    %28 = arith.negf %27 : vector<8x128xf32>
    %29 = math.exp %28 : vector<8x128xf32>
    %cst_9 = arith.constant 1.000000e+00 : f32
    %30 = vector.broadcast %cst_9 : f32 to vector<8x128xf32>
    %31 = arith.addf %30, %29 : vector<8x128xf32>
    %32 = arith.divf %30, %31 : vector<8x128xf32>
    %33 = arith.mulf %24, %3 : vector<8x128xf32>
    %34 = arith.mulf %18, %26 : vector<8x128xf32>
    %35 = arith.addf %33, %34 : vector<8x128xf32>
    %36 = math.tanh %35 : vector<8x128xf32>
    %37 = arith.mulf %32, %36 : vector<8x128xf32>
    %c1_i32 = arith.constant 1 : i32
    %38 = arith.index_cast %c1_i32 : i32 to index
    %c0_10 = arith.constant 0 : index
    %c0_11 = arith.constant 0 : index
    %39 = vector.load %arg0[%38, %c0_10, %c0_11] : memref<8x8x512xbf16, #tpu.memory_space<vmem>>, vector<1x8x512xbf16>
    %40 = vector.shape_cast %39 : vector<1x8x512xbf16> to vector<8x512xbf16>
    %41 = arith.extf %40 : vector<8x512xbf16> to vector<8x512xf32>
    %42 = vector.broadcast %1 : vector<1x512xf32> to vector<8x512xf32>
    %43 = arith.addf %41, %42 : vector<8x512xf32>
    %44 = arith.truncf %37 : vector<8x128xf32> to vector<8x128xbf16>
    %cst_12 = arith.constant dense<0.000000e+00> : vector<8x512xf32>
    %45 = tpu.matmul %44, %0, %cst_12 {dimension_numbers = #tpu.dot_dimension_numbers<[1], [0], [0], [1], [0, 0, 1, 1], [], []>} : vector<8x128xbf16>, vector<128x512xbf16>, vector<8x512xf32> -> vector<8x512xf32>
    %46 = arith.addf %43, %45 : vector<8x512xf32>
    %47 = vector.extract_strided_slice %46 {offsets = [0, 0], sizes = [8, 128], strides = [1, 1]} : vector<8x512xf32> to vector<8x128xf32>
    %48 = arith.negf %47 : vector<8x128xf32>
    %49 = math.exp %48 : vector<8x128xf32>
    %cst_13 = arith.constant 1.000000e+00 : f32
    %50 = vector.broadcast %cst_13 : f32 to vector<8x128xf32>
    %51 = arith.addf %50, %49 : vector<8x128xf32>
    %52 = arith.divf %50, %51 : vector<8x128xf32>
    %53 = vector.extract_strided_slice %46 {offsets = [0, 128], sizes = [8, 128], strides = [1, 1]} : vector<8x512xf32> to vector<8x128xf32>
    %54 = arith.negf %53 : vector<8x128xf32>
    %55 = math.exp %54 : vector<8x128xf32>
    %cst_14 = arith.constant 1.000000e+00 : f32
    %56 = vector.broadcast %cst_14 : f32 to vector<8x128xf32>
    %57 = arith.addf %56, %55 : vector<8x128xf32>
    %58 = arith.divf %56, %57 : vector<8x128xf32>
    %59 = vector.extract_strided_slice %46 {offsets = [0, 256], sizes = [8, 128], strides = [1, 1]} : vector<8x512xf32> to vector<8x128xf32>
    %60 = math.tanh %59 : vector<8x128xf32>
    %61 = vector.extract_strided_slice %46 {offsets = [0, 384], sizes = [8, 128], strides = [1, 1]} : vector<8x512xf32> to vector<8x128xf32>
    %62 = arith.negf %61 : vector<8x128xf32>
    %63 = math.exp %62 : vector<8x128xf32>
    %cst_15 = arith.constant 1.000000e+00 : f32
    %64 = vector.broadcast %cst_15 : f32 to vector<8x128xf32>
    %65 = arith.addf %64, %63 : vector<8x128xf32>
    %66 = arith.divf %64, %65 : vector<8x128xf32>
    %67 = arith.mulf %58, %35 : vector<8x128xf32>
    %68 = arith.mulf %52, %60 : vector<8x128xf32>
    %69 = arith.addf %67, %68 : vector<8x128xf32>
    %70 = math.tanh %69 : vector<8x128xf32>
    %71 = arith.mulf %66, %70 : vector<8x128xf32>
    %c2_i32 = arith.constant 2 : i32
    %72 = arith.index_cast %c2_i32 : i32 to index
    %c0_16 = arith.constant 0 : index
    %c0_17 = arith.constant 0 : index
    %73 = vector.load %arg0[%72, %c0_16, %c0_17] : memref<8x8x512xbf16, #tpu.memory_space<vmem>>, vector<1x8x512xbf16>
    %74 = vector.shape_cast %73 : vector<1x8x512xbf16> to vector<8x512xbf16>
    %75 = arith.extf %74 : vector<8x512xbf16> to vector<8x512xf32>
    %76 = vector.broadcast %1 : vector<1x512xf32> to vector<8x512xf32>
    %77 = arith.addf %75, %76 : vector<8x512xf32>
    %78 = arith.truncf %71 : vector<8x128xf32> to vector<8x128xbf16>
    %cst_18 = arith.constant dense<0.000000e+00> : vector<8x512xf32>
    %79 = tpu.matmul %78, %0, %cst_18 {dimension_numbers = #tpu.dot_dimension_numbers<[1], [0], [0], [1], [0, 0, 1, 1], [], []>} : vector<8x128xbf16>, vector<128x512xbf16>, vector<8x512xf32> -> vector<8x512xf32>
    %80 = arith.addf %77, %79 : vector<8x512xf32>
    %81 = vector.extract_strided_slice %80 {offsets = [0, 0], sizes = [8, 128], strides = [1, 1]} : vector<8x512xf32> to vector<8x128xf32>
    %82 = arith.negf %81 : vector<8x128xf32>
    %83 = math.exp %82 : vector<8x128xf32>
    %cst_19 = arith.constant 1.000000e+00 : f32
    %84 = vector.broadcast %cst_19 : f32 to vector<8x128xf32>
    %85 = arith.addf %84, %83 : vector<8x128xf32>
    %86 = arith.divf %84, %85 : vector<8x128xf32>
    %87 = vector.extract_strided_slice %80 {offsets = [0, 128], sizes = [8, 128], strides = [1, 1]} : vector<8x512xf32> to vector<8x128xf32>
    %88 = arith.negf %87 : vector<8x128xf32>
    %89 = math.exp %88 : vector<8x128xf32>
    %cst_20 = arith.constant 1.000000e+00 : f32
    %90 = vector.broadcast %cst_20 : f32 to vector<8x128xf32>
    %91 = arith.addf %90, %89 : vector<8x128xf32>
    %92 = arith.divf %90, %91 : vector<8x128xf32>
    %93 = vector.extract_strided_slice %80 {offsets = [0, 256], sizes = [8, 128], strides = [1, 1]} : vector<8x512xf32> to vector<8x128xf32>
    %94 = math.tanh %93 : vector<8x128xf32>
    %95 = vector.extract_strided_slice %80 {offsets = [0, 384], sizes = [8, 128], strides = [1, 1]} : vector<8x512xf32> to vector<8x128xf32>
    %96 = arith.negf %95 : vector<8x128xf32>
    %97 = math.exp %96 : vector<8x128xf32>
    %cst_21 = arith.constant 1.000000e+00 : f32
    %98 = vector.broadcast %cst_21 : f32 to vector<8x128xf32>
    %99 = arith.addf %98, %97 : vector<8x128xf32>
    %100 = arith.divf %98, %99 : vector<8x128xf32>
    %101 = arith.mulf %92, %69 : vector<8x128xf32>
    %102 = arith.mulf %86, %94 : vector<8x128xf32>
    %103 = arith.addf %101, %102 : vector<8x128xf32>
    %104 = math.tanh %103 : vector<8x128xf32>
    %105 = arith.mulf %100, %104 : vector<8x128xf32>
    %c3_i32 = arith.constant 3 : i32
    %106 = arith.index_cast %c3_i32 : i32 to index
    %c0_22 = arith.constant 0 : index
    %c0_23 = arith.constant 0 : index
    %107 = vector.load %arg0[%106, %c0_22, %c0_23] : memref<8x8x512xbf16, #tpu.memory_space<vmem>>, vector<1x8x512xbf16>
    %108 = vector.shape_cast %107 : vector<1x8x512xbf16> to vector<8x512xbf16>
    %109 = arith.extf %108 : vector<8x512xbf16> to vector<8x512xf32>
    %110 = vector.broadcast %1 : vector<1x512xf32> to vector<8x512xf32>
    %111 = arith.addf %109, %110 : vector<8x512xf32>
    %112 = arith.truncf %105 : vector<8x128xf32> to vector<8x128xbf16>
    %cst_24 = arith.constant dense<0.000000e+00> : vector<8x512xf32>
    %113 = tpu.matmul %112, %0, %cst_24 {dimension_numbers = #tpu.dot_dimension_numbers<[1], [0], [0], [1], [0, 0, 1, 1], [], []>} : vector<8x128xbf16>, vector<128x512xbf16>, vector<8x512xf32> -> vector<8x512xf32>
    %114 = arith.addf %111, %113 : vector<8x512xf32>
    %115 = vector.extract_strided_slice %114 {offsets = [0, 0], sizes = [8, 128], strides = [1, 1]} : vector<8x512xf32> to vector<8x128xf32>
    %116 = arith.negf %115 : vector<8x128xf32>
    %117 = math.exp %116 : vector<8x128xf32>
    %cst_25 = arith.constant 1.000000e+00 : f32
    %118 = vector.broadcast %cst_25 : f32 to vector<8x128xf32>
    %119 = arith.addf %118, %117 : vector<8x128xf32>
    %120 = arith.divf %118, %119 : vector<8x128xf32>
    %121 = vector.extract_strided_slice %114 {offsets = [0, 128], sizes = [8, 128], strides = [1, 1]} : vector<8x512xf32> to vector<8x128xf32>
    %122 = arith.negf %121 : vector<8x128xf32>
    %123 = math.exp %122 : vector<8x128xf32>
    %cst_26 = arith.constant 1.000000e+00 : f32
    %124 = vector.broadcast %cst_26 : f32 to vector<8x128xf32>
    %125 = arith.addf %124, %123 : vector<8x128xf32>
    %126 = arith.divf %124, %125 : vector<8x128xf32>
    %127 = vector.extract_strided_slice %114 {offsets = [0, 256], sizes = [8, 128], strides = [1, 1]} : vector<8x512xf32> to vector<8x128xf32>
    %128 = math.tanh %127 : vector<8x128xf32>
    %129 = vector.extract_strided_slice %114 {offsets = [0, 384], sizes = [8, 128], strides = [1, 1]} : vector<8x512xf32> to vector<8x128xf32>
    %130 = arith.negf %129 : vector<8x128xf32>
    %131 = math.exp %130 : vector<8x128xf32>
    %cst_27 = arith.constant 1.000000e+00 : f32
    %132 = vector.broadcast %cst_27 : f32 to vector<8x128xf32>
    %133 = arith.addf %132, %131 : vector<8x128xf32>
    %134 = arith.divf %132, %133 : vector<8x128xf32>
    %135 = arith.mulf %126, %103 : vector<8x128xf32>
    %136 = arith.mulf %120, %128 : vector<8x128xf32>
    %137 = arith.addf %135, %136 : vector<8x128xf32>
    %138 = math.tanh %137 : vector<8x128xf32>
    %139 = arith.mulf %134, %138 : vector<8x128xf32>
    %c4_i32 = arith.constant 4 : i32
    %140 = arith.index_cast %c4_i32 : i32 to index
    %c0_28 = arith.constant 0 : index
    %c0_29 = arith.constant 0 : index
    %141 = vector.load %arg0[%140, %c0_28, %c0_29] : memref<8x8x512xbf16, #tpu.memory_space<vmem>>, vector<1x8x512xbf16>
    %142 = vector.shape_cast %141 : vector<1x8x512xbf16> to vector<8x512xbf16>
    %143 = arith.extf %142 : vector<8x512xbf16> to vector<8x512xf32>
    %144 = vector.broadcast %1 : vector<1x512xf32> to vector<8x512xf32>
    %145 = arith.addf %143, %144 : vector<8x512xf32>
    %146 = arith.truncf %139 : vector<8x128xf32> to vector<8x128xbf16>
    %cst_30 = arith.constant dense<0.000000e+00> : vector<8x512xf32>
    %147 = tpu.matmul %146, %0, %cst_30 {dimension_numbers = #tpu.dot_dimension_numbers<[1], [0], [0], [1], [0, 0, 1, 1], [], []>} : vector<8x128xbf16>, vector<128x512xbf16>, vector<8x512xf32> -> vector<8x512xf32>
    %148 = arith.addf %145, %147 : vector<8x512xf32>
    %149 = vector.extract_strided_slice %148 {offsets = [0, 0], sizes = [8, 128], strides = [1, 1]} : vector<8x512xf32> to vector<8x128xf32>
    %150 = arith.negf %149 : vector<8x128xf32>
    %151 = math.exp %150 : vector<8x128xf32>
    %cst_31 = arith.constant 1.000000e+00 : f32
    %152 = vector.broadcast %cst_31 : f32 to vector<8x128xf32>
    %153 = arith.addf %152, %151 : vector<8x128xf32>
    %154 = arith.divf %152, %153 : vector<8x128xf32>
    %155 = vector.extract_strided_slice %148 {offsets = [0, 128], sizes = [8, 128], strides = [1, 1]} : vector<8x512xf32> to vector<8x128xf32>
    %156 = arith.negf %155 : vector<8x128xf32>
    %157 = math.exp %156 : vector<8x128xf32>
    %cst_32 = arith.constant 1.000000e+00 : f32
    %158 = vector.broadcast %cst_32 : f32 to vector<8x128xf32>
    %159 = arith.addf %158, %157 : vector<8x128xf32>
    %160 = arith.divf %158, %159 : vector<8x128xf32>
    %161 = vector.extract_strided_slice %148 {offsets = [0, 256], sizes = [8, 128], strides = [1, 1]} : vector<8x512xf32> to vector<8x128xf32>
    %162 = math.tanh %161 : vector<8x128xf32>
    %163 = vector.extract_strided_slice %148 {offsets = [0, 384], sizes = [8, 128], strides = [1, 1]} : vector<8x512xf32> to vector<8x128xf32>
    %164 = arith.negf %163 : vector<8x128xf32>
    %165 = math.exp %164 : vector<8x128xf32>
    %cst_33 = arith.constant 1.000000e+00 : f32
    %166 = vector.broadcast %cst_33 : f32 to vector<8x128xf32>
    %167 = arith.addf %166, %165 : vector<8x128xf32>
    %168 = arith.divf %166, %167 : vector<8x128xf32>
    %169 = arith.mulf %160, %137 : vector<8x128xf32>
    %170 = arith.mulf %154, %162 : vector<8x128xf32>
    %171 = arith.addf %169, %170 : vector<8x128xf32>
    %172 = math.tanh %171 : vector<8x128xf32>
    %173 = arith.mulf %168, %172 : vector<8x128xf32>
    %c5_i32 = arith.constant 5 : i32
    %174 = arith.index_cast %c5_i32 : i32 to index
    %c0_34 = arith.constant 0 : index
    %c0_35 = arith.constant 0 : index
    %175 = vector.load %arg0[%174, %c0_34, %c0_35] : memref<8x8x512xbf16, #tpu.memory_space<vmem>>, vector<1x8x512xbf16>
    %176 = vector.shape_cast %175 : vector<1x8x512xbf16> to vector<8x512xbf16>
    %177 = arith.extf %176 : vector<8x512xbf16> to vector<8x512xf32>
    %178 = vector.broadcast %1 : vector<1x512xf32> to vector<8x512xf32>
    %179 = arith.addf %177, %178 : vector<8x512xf32>
    %180 = arith.truncf %173 : vector<8x128xf32> to vector<8x128xbf16>
    %cst_36 = arith.constant dense<0.000000e+00> : vector<8x512xf32>
    %181 = tpu.matmul %180, %0, %cst_36 {dimension_numbers = #tpu.dot_dimension_numbers<[1], [0], [0], [1], [0, 0, 1, 1], [], []>} : vector<8x128xbf16>, vector<128x512xbf16>, vector<8x512xf32> -> vector<8x512xf32>
    %182 = arith.addf %179, %181 : vector<8x512xf32>
    %183 = vector.extract_strided_slice %182 {offsets = [0, 0], sizes = [8, 128], strides = [1, 1]} : vector<8x512xf32> to vector<8x128xf32>
    %184 = arith.negf %183 : vector<8x128xf32>
    %185 = math.exp %184 : vector<8x128xf32>
    %cst_37 = arith.constant 1.000000e+00 : f32
    %186 = vector.broadcast %cst_37 : f32 to vector<8x128xf32>
    %187 = arith.addf %186, %185 : vector<8x128xf32>
    %188 = arith.divf %186, %187 : vector<8x128xf32>
    %189 = vector.extract_strided_slice %182 {offsets = [0, 128], sizes = [8, 128], strides = [1, 1]} : vector<8x512xf32> to vector<8x128xf32>
    %190 = arith.negf %189 : vector<8x128xf32>
    %191 = math.exp %190 : vector<8x128xf32>
    %cst_38 = arith.constant 1.000000e+00 : f32
    %192 = vector.broadcast %cst_38 : f32 to vector<8x128xf32>
    %193 = arith.addf %192, %191 : vector<8x128xf32>
    %194 = arith.divf %192, %193 : vector<8x128xf32>
    %195 = vector.extract_strided_slice %182 {offsets = [0, 256], sizes = [8, 128], strides = [1, 1]} : vector<8x512xf32> to vector<8x128xf32>
    %196 = math.tanh %195 : vector<8x128xf32>
    %197 = vector.extract_strided_slice %182 {offsets = [0, 384], sizes = [8, 128], strides = [1, 1]} : vector<8x512xf32> to vector<8x128xf32>
    %198 = arith.negf %197 : vector<8x128xf32>
    %199 = math.exp %198 : vector<8x128xf32>
    %cst_39 = arith.constant 1.000000e+00 : f32
    %200 = vector.broadcast %cst_39 : f32 to vector<8x128xf32>
    %201 = arith.addf %200, %199 : vector<8x128xf32>
    %202 = arith.divf %200, %201 : vector<8x128xf32>
    %203 = arith.mulf %194, %171 : vector<8x128xf32>
    %204 = arith.mulf %188, %196 : vector<8x128xf32>
    %205 = arith.addf %203, %204 : vector<8x128xf32>
    %206 = math.tanh %205 : vector<8x128xf32>
    %207 = arith.mulf %202, %206 : vector<8x128xf32>
    %c6_i32 = arith.constant 6 : i32
    %208 = arith.index_cast %c6_i32 : i32 to index
    %c0_40 = arith.constant 0 : index
    %c0_41 = arith.constant 0 : index
    %209 = vector.load %arg0[%208, %c0_40, %c0_41] : memref<8x8x512xbf16, #tpu.memory_space<vmem>>, vector<1x8x512xbf16>
    %210 = vector.shape_cast %209 : vector<1x8x512xbf16> to vector<8x512xbf16>
    %211 = arith.extf %210 : vector<8x512xbf16> to vector<8x512xf32>
    %212 = vector.broadcast %1 : vector<1x512xf32> to vector<8x512xf32>
    %213 = arith.addf %211, %212 : vector<8x512xf32>
    %214 = arith.truncf %207 : vector<8x128xf32> to vector<8x128xbf16>
    %cst_42 = arith.constant dense<0.000000e+00> : vector<8x512xf32>
    %215 = tpu.matmul %214, %0, %cst_42 {dimension_numbers = #tpu.dot_dimension_numbers<[1], [0], [0], [1], [0, 0, 1, 1], [], []>} : vector<8x128xbf16>, vector<128x512xbf16>, vector<8x512xf32> -> vector<8x512xf32>
    %216 = arith.addf %213, %215 : vector<8x512xf32>
    %217 = vector.extract_strided_slice %216 {offsets = [0, 0], sizes = [8, 128], strides = [1, 1]} : vector<8x512xf32> to vector<8x128xf32>
    %218 = arith.negf %217 : vector<8x128xf32>
    %219 = math.exp %218 : vector<8x128xf32>
    %cst_43 = arith.constant 1.000000e+00 : f32
    %220 = vector.broadcast %cst_43 : f32 to vector<8x128xf32>
    %221 = arith.addf %220, %219 : vector<8x128xf32>
    %222 = arith.divf %220, %221 : vector<8x128xf32>
    %223 = vector.extract_strided_slice %216 {offsets = [0, 128], sizes = [8, 128], strides = [1, 1]} : vector<8x512xf32> to vector<8x128xf32>
    %224 = arith.negf %223 : vector<8x128xf32>
    %225 = math.exp %224 : vector<8x128xf32>
    %cst_44 = arith.constant 1.000000e+00 : f32
    %226 = vector.broadcast %cst_44 : f32 to vector<8x128xf32>
    %227 = arith.addf %226, %225 : vector<8x128xf32>
    %228 = arith.divf %226, %227 : vector<8x128xf32>
    %229 = vector.extract_strided_slice %216 {offsets = [0, 256], sizes = [8, 128], strides = [1, 1]} : vector<8x512xf32> to vector<8x128xf32>
    %230 = math.tanh %229 : vector<8x128xf32>
    %231 = vector.extract_strided_slice %216 {offsets = [0, 384], sizes = [8, 128], strides = [1, 1]} : vector<8x512xf32> to vector<8x128xf32>
    %232 = arith.negf %231 : vector<8x128xf32>
    %233 = math.exp %232 : vector<8x128xf32>
    %cst_45 = arith.constant 1.000000e+00 : f32
    %234 = vector.broadcast %cst_45 : f32 to vector<8x128xf32>
    %235 = arith.addf %234, %233 : vector<8x128xf32>
    %236 = arith.divf %234, %235 : vector<8x128xf32>
    %237 = arith.mulf %228, %205 : vector<8x128xf32>
    %238 = arith.mulf %222, %230 : vector<8x128xf32>
    %239 = arith.addf %237, %238 : vector<8x128xf32>
    %240 = math.tanh %239 : vector<8x128xf32>
    %241 = arith.mulf %236, %240 : vector<8x128xf32>
    %c7_i32 = arith.constant 7 : i32
    %242 = arith.index_cast %c7_i32 : i32 to index
    %c0_46 = arith.constant 0 : index
    %c0_47 = arith.constant 0 : index
    %243 = vector.load %arg0[%242, %c0_46, %c0_47] : memref<8x8x512xbf16, #tpu.memory_space<vmem>>, vector<1x8x512xbf16>
    %244 = vector.shape_cast %243 : vector<1x8x512xbf16> to vector<8x512xbf16>
    %245 = arith.extf %244 : vector<8x512xbf16> to vector<8x512xf32>
    %246 = vector.broadcast %1 : vector<1x512xf32> to vector<8x512xf32>
    %247 = arith.addf %245, %246 : vector<8x512xf32>
    %248 = arith.truncf %241 : vector<8x128xf32> to vector<8x128xbf16>
    %cst_48 = arith.constant dense<0.000000e+00> : vector<8x512xf32>
    %249 = tpu.matmul %248, %0, %cst_48 {dimension_numbers = #tpu.dot_dimension_numbers<[1], [0], [0], [1], [0, 0, 1, 1], [], []>} : vector<8x128xbf16>, vector<128x512xbf16>, vector<8x512xf32> -> vector<8x512xf32>
    %250 = arith.addf %247, %249 : vector<8x512xf32>
    %251 = vector.extract_strided_slice %250 {offsets = [0, 0], sizes = [8, 128], strides = [1, 1]} : vector<8x512xf32> to vector<8x128xf32>
    %252 = arith.negf %251 : vector<8x128xf32>
    %253 = math.exp %252 : vector<8x128xf32>
    %cst_49 = arith.constant 1.000000e+00 : f32
    %254 = vector.broadcast %cst_49 : f32 to vector<8x128xf32>
    %255 = arith.addf %254, %253 : vector<8x128xf32>
    %256 = arith.divf %254, %255 : vector<8x128xf32>
    %257 = vector.extract_strided_slice %250 {offsets = [0, 128], sizes = [8, 128], strides = [1, 1]} : vector<8x512xf32> to vector<8x128xf32>
    %258 = arith.negf %257 : vector<8x128xf32>
    %259 = math.exp %258 : vector<8x128xf32>
    %cst_50 = arith.constant 1.000000e+00 : f32
    %260 = vector.broadcast %cst_50 : f32 to vector<8x128xf32>
    %261 = arith.addf %260, %259 : vector<8x128xf32>
    %262 = arith.divf %260, %261 : vector<8x128xf32>
    %263 = vector.extract_strided_slice %250 {offsets = [0, 256], sizes = [8, 128], strides = [1, 1]} : vector<8x512xf32> to vector<8x128xf32>
    %264 = math.tanh %263 : vector<8x128xf32>
    %265 = vector.extract_strided_slice %250 {offsets = [0, 384], sizes = [8, 128], strides = [1, 1]} : vector<8x512xf32> to vector<8x128xf32>
    %266 = arith.negf %265 : vector<8x128xf32>
    %267 = math.exp %266 : vector<8x128xf32>
    %cst_51 = arith.constant 1.000000e+00 : f32
    %268 = vector.broadcast %cst_51 : f32 to vector<8x128xf32>
    %269 = arith.addf %268, %267 : vector<8x128xf32>
    %270 = arith.divf %268, %269 : vector<8x128xf32>
    %271 = arith.mulf %262, %239 : vector<8x128xf32>
    %272 = arith.mulf %256, %264 : vector<8x128xf32>
    %273 = arith.addf %271, %272 : vector<8x128xf32>
    %274 = math.tanh %273 : vector<8x128xf32>
    %275 = arith.mulf %270, %274 : vector<8x128xf32>
    %c8_i32 = arith.constant 8 : i32
    %276 = arith.truncf %275 : vector<8x128xf32> to vector<8x128xbf16>
    %c0_52 = arith.constant 0 : index
    %c0_53 = arith.constant 0 : index
    %277 = vector.load %arg3[%c0_52, %c0_53] : memref<128x128xbf16, #tpu.memory_space<vmem>>, vector<128x128xbf16>
    %cst_54 = arith.constant dense<0.000000e+00> : vector<8x128xf32>
    %278 = tpu.matmul %276, %277, %cst_54 {dimension_numbers = #tpu.dot_dimension_numbers<[1], [0], [0], [1], [0, 0, 1, 1], [], []>} : vector<8x128xbf16>, vector<128x128xbf16>, vector<8x128xf32> -> vector<8x128xf32>
    %c0_55 = arith.constant 0 : index
    %c0_56 = arith.constant 0 : index
    %279 = vector.load %arg4[%c0_55, %c0_56] : memref<1x128xf32, #tpu.memory_space<vmem>>, vector<1x128xf32>
    %280 = vector.broadcast %279 : vector<1x128xf32> to vector<8x128xf32>
    %281 = arith.addf %278, %280 : vector<8x128xf32>
    %c0_57 = arith.constant 0 : index
    %c0_58 = arith.constant 0 : index
    %282 = vector.load %arg5[%c0_57, %c0_58] : memref<8x128xf32, #tpu.memory_space<vmem>>, vector<8x128xf32>
    tpu.vector_store %arg5[%c0_57, %c0_58], %281 {strides = array<i32>} : memref<8x128xf32, #tpu.memory_space<vmem>>, vector<8x128xf32>,
    return
  }
}

</mosaic_0001>

<llo_original>
// kernel: tpu_custom_call.1
$region0: #{tpu_custom_call.1}
  #allocation0 [shape = 'u32[]', space=smem, size = 0x4, offset = 0x4, fixed_abs, tag = 'smem constant byte address 0x4 - core index']
  #allocation1 [shape = 'u32[144,128]{1,0:T(1,128)}', space=vmem, size = 0x12000, scoped, tag = 'internal scratch']
  %s0 = inlined_call_operand.hbm [shape: bf16[8,8,512], index: 0, kind: input, shape index: {}]
  %s1 = inlined_call_operand.hbm [shape: f32[1,512], index: 1, kind: input, shape index: {}]
  %s2 = inlined_call_operand.hbm [shape: bf16[128,512], index: 2, kind: input, shape index: {}]
  %s3 = inlined_call_operand.hbm [shape: bf16[128,128], index: 3, kind: input, shape index: {}]
  %s4 = inlined_call_operand.vmem [shape: f32[1,128], index: 4, kind: input, shape index: {}]
  %s5 = inlined_call_operand.hbm [shape: f32[8,128], index: 5, kind: output, shape index: {}]
  %s6 = sld [smem:[#allocation0]]
  $region46: #{tpu_custom_call.1} parent=0
    _
  %s8 = ssub.s32 1, %s6
  %s9 = scalar_select 0, %s8, %s6
  $region1: #{tpu_custom_call.1} parent=0
    #allocation2 [shape = 'u8[65536]{0}', space=vmem, size = 0x10000, scoped, tag = 'input window, operand 0, single buffered']
    #allocation3 [shape = 's32[1]{0}', space=sflag, size = 0x4, scoped, tag = 'scoped memory for tpu_custom_call.1']
    #allocation4 [shape = 's32[1]{0}', space=sflag, size = 0x4, scoped, tag = 'scoped memory for tpu_custom_call.1']
    #allocation5 [shape = 'u8[2048]{0}', space=vmem, size = 0x800, scoped, tag = 'input window, operand 1, single buffered']
    #allocation6 [shape = 's32[1]{0}', space=sflag, size = 0x4, scoped, tag = 'scoped memory for tpu_custom_call.1']
    #allocation7 [shape = 'u8[131072]{0}', space=vmem, size = 0x20000, scoped, tag = 'input window, operand 2, single buffered']
    #allocation8 [shape = 'u8[32768]{0}', space=vmem, size = 0x8000, scoped, tag = 'input window, operand 3, single buffered']
    #allocation9 [shape = 's32[1]{0}', space=sflag, size = 0x4, scoped, tag = 'scoped memory for tpu_custom_call.1']
    #allocation10 [shape = 'u8[4096]{0}', space=vmem, size = 0x1000, scoped, tag = 'output window, operand 0, single buffered']
    %10 = vsyncpa [#allocation3], 0
    %11 = vsyncpa [#allocation6], 0
    %12 = vsyncpa [#allocation9], 0
    %13 = vsyncpa [#allocation4], 0
    // Predicated region
    $region2: #{tpu_custom_call.1} parent=1 // pred_check
      _
    $region3: #{tpu_custom_call.1} parent=1 // pred_check_branch
      %15 = sbr.rel (0) target = $region5
    $region4: #{tpu_custom_call.1} parent=1 // pred_region
      %s17 = ssub.s32 2048, 2048
      %18 = vsyncadd [#allocation3], %s17
      %s19 = sshll.u32 [#allocation2], 4
      %s20 = int_to_ptr.vmem [resolvable:$true] %s19
      %25 = dma.hbm_to_vmem [thread:$0]  %s0, 2048, %s20, [#allocation3], 256, 256, 16
    $region5: #{tpu_custom_call.1} parent=1 // pred_fallthru
      _
    // Predicated region
    $region6: #{tpu_custom_call.1} parent=1 // pred_check
      _
    $region7: #{tpu_custom_call.1} parent=1 // pred_check_branch
      %27 = sbr.rel (0) target = $region9
    $region8: #{tpu_custom_call.1} parent=1 // pred_region
      %s29 = ssub.s32 64, 64
      %30 = vsyncadd [#allocation6], %s29
      %s32 = sshll.u32 [#allocation5], 4
      %s33 = int_to_ptr.vmem [resolvable:$true] %s32
      %35 = dma.hbm_to_vmem [thread:$0]  %s1, 64, %s33, [#allocation6]
    $region9: #{tpu_custom_call.1} parent=1 // pred_fallthru
      _
    // Predicated region
    $region10: #{tpu_custom_call.1} parent=1 // pred_check
      _
    $region11: #{tpu_custom_call.1} parent=1 // pred_check_branch
      %37 = sbr.rel (0) target = $region13
    $region12: #{tpu_custom_call.1} parent=1 // pred_region
      %s39 = ssub.s32 4096, 4096
      %40 = vsyncadd [#allocation6], %s39
      %s41 = sshll.u32 [#allocation7], 4
      %s42 = int_to_ptr.vmem [resolvable:$true] %s41
      %47 = dma.hbm_to_vmem [thread:$0]  %s2, 4096, %s42, [#allocation6], 256, 256, 16
    $region13: #{tpu_custom_call.1} parent=1 // pred_fallthru
      _
    // Predicated region
    $region14: #{tpu_custom_call.1} parent=1 // pred_check
      _
    $region15: #{tpu_custom_call.1} parent=1 // pred_check_branch
      %49 = sbr.rel (0) target = $region17
    $region16: #{tpu_custom_call.1} parent=1 // pred_region
      %s51 = ssub.s32 1024, 1024
      %52 = vsyncadd [#allocation9], %s51
      %s53 = sshll.u32 [#allocation8], 4
      %s54 = int_to_ptr.vmem [resolvable:$true] %s53
      %59 = dma.hbm_to_vmem [thread:$0]  %s3, 1024, %s54, [#allocation9], 64, 64, 4
    $region17: #{tpu_custom_call.1} parent=1 // pred_fallthru
      _
    // Predicated region
    $region18: #{tpu_custom_call.1} parent=1 // pred_check
      _
    $region19: #{tpu_custom_call.1} parent=1 // pred_check_branch
      %61 = sbr.rel (0) target = $region21
    $region20: #{tpu_custom_call.1} parent=1 // pred_region
      _
    $region21: #{tpu_custom_call.1} parent=1 // pred_fallthru
      _
    // Predicated region
    $region22: #{tpu_custom_call.1} parent=1 // pred_check
      _
    $region23: #{tpu_custom_call.1} parent=1 // pred_check_branch
      %63 = sbr.rel (0) target = $region25
    $region24: #{tpu_custom_call.1} parent=1 // pred_region
      %64 = dma.done [#allocation3], 2048
    $region25: #{tpu_custom_call.1} parent=1 // pred_fallthru
      _
    // Predicated region
    $region26: #{tpu_custom_call.1} parent=1 // pred_check
      _
    $region27: #{tpu_custom_call.1} parent=1 // pred_check_branch
      %66 = sbr.rel (0) target = $region29
    $region28: #{tpu_custom_call.1} parent=1 // pred_region
      %67 = dma.done [#allocation6], 64
    $region29: #{tpu_custom_call.1} parent=1 // pred_fallthru
      _
    // Predicated region
    $region30: #{tpu_custom_call.1} parent=1 // pred_check
      _
    $region31: #{tpu_custom_call.1} parent=1 // pred_check_branch
      %69 = sbr.rel (0) target = $region33
    $region32: #{tpu_custom_call.1} parent=1 // pred_region
      %70 = dma.done [#allocation6], 4096
    $region33: #{tpu_custom_call.1} parent=1 // pred_fallthru
      _
    // Predicated region
    $region34: #{tpu_custom_call.1} parent=1 // pred_check
      _
    $region35: #{tpu_custom_call.1} parent=1 // pred_check_branch
      %72 = sbr.rel (0) target = $region37
    $region36: #{tpu_custom_call.1} parent=1 // pred_region
      %73 = dma.done [#allocation9], 1024
    $region37: #{tpu_custom_call.1} parent=1 // pred_fallthru
      _
    %v75 = vld [vmem:[#allocation7] sm:$0xff]
    %v76 = vld [vmem:[#allocation7 + $0x8] sm:$0xff]
    %v77 = vld [vmem:[#allocation7 + $0x10] sm:$0xff]
    %v78 = vld [vmem:[#allocation7 + $0x18] sm:$0xff]
    %v79 = vld [vmem:[#allocation7 + $0x20] sm:$0xff]
    %v80 = vld [vmem:[#allocation7 + $0x28] sm:$0xff]
    %v81 = vld [vmem:[#allocation7 + $0x30] sm:$0xff]
    %v82 = vld [vmem:[#allocation7 + $0x38] sm:$0xff]
    %v83 = vld [vmem:[#allocation7 + $0x40] sm:$0xff]
    %v84 = vld [vmem:[#allocation7 + $0x48] sm:$0xff]
    %v85 = vld [vmem:[#allocation7 + $0x50] sm:$0xff]
    %v86 = vld [vmem:[#allocation7 + $0x58] sm:$0xff]
    %v87 = vld [vmem:[#allocation7 + $0x60] sm:$0xff]
    %v88 = vld [vmem:[#allocation7 + $0x68] sm:$0xff]
    %v89 = vld [vmem:[#allocation7 + $0x70] sm:$0xff]
    %v90 = vld [vmem:[#allocation7 + $0x78] sm:$0xff]
    %v91 = vld [vmem:[#allocation7 + $0x80] sm:$0xff]
    %v92 = vld [vmem:[#allocation7 + $0x88] sm:$0xff]
    %v93 = vld [vmem:[#allocation7 + $0x90] sm:$0xff]
    %v94 = vld [vmem:[#allocation7 + $0x98] sm:$0xff]
    %v95 = vld [vmem:[#allocation7 + $0xa0] sm:$0xff]
    %v96 = vld [vmem:[#allocation7 + $0xa8] sm:$0xff]
    %v97 = vld [vmem:[#allocation7 + $0xb0] sm:$0xff]
    %v98 = vld [vmem:[#allocation7 + $0xb8] sm:$0xff]
    %v99 = vld [vmem:[#allocation7 + $0xc0] sm:$0xff]
    %v100 = vld [vmem:[#allocation7 + $0xc8] sm:$0xff]
    %v101 = vld [vmem:[#allocation7 + $0xd0] sm:$0xff]
    %v102 = vld [vmem:[#allocation7 + $0xd8] sm:$0xff]
    %v103 = vld [vmem:[#allocation7 + $0xe0] sm:$0xff]
    %v104 = vld [vmem:[#allocation7 + $0xe8] sm:$0xff]
    %v105 = vld [vmem:[#allocation7 + $0xf0] sm:$0xff]
    %v106 = vld [vmem:[#allocation7 + $0xf8] sm:$0xff]
    %v107 = vld [vmem:[#allocation5] sm:$0xf]
    %v108 = vld [vmem:[#allocation2] sm:$0xff]
    %v109 = vld [vmem:[#allocation2 + $0x8] sm:$0xff]
    %v110 = vunpack.c.l.bf16 %v108
    %v111 = vunpack.c.h.bf16 %v108
    %v112 = vunpack.c.l.bf16 %v109
    %v113 = vunpack.c.h.bf16 %v109
    %v115 = vlaneseq
    %v116 = vshrl.u32 %v115, 7
    %v117 = vsub.s32 0, %v116
    %v118 = vrot.slane %v107, %v117
    %v119 = vlaneseq
    %v120 = vshrl.u32 %v119, 7
    %v121 = vsub.s32 1, %v120
    %v122 = vrot.slane %v107, %v121
    %v123 = vlaneseq
    %v124 = vshrl.u32 %v123, 7
    %v125 = vsub.s32 2, %v124
    %v126 = vrot.slane %v107, %v125
    %v127 = vlaneseq
    %v128 = vshrl.u32 %v127, 7
    %v129 = vsub.s32 3, %v128
    %v130 = vrot.slane %v107, %v129
    %v135 = vadd.f32 %v110, %v118
    %v136 = vadd.f32 %v111, %v122
    %v137 = vadd.f32 %v112, %v126
    %v138 = vadd.f32 %v113, %v130
    %v171 = vunpack.c.l.b16 %v75
    %v172 = vunpack.c.h.b16 %v75
    %v173 = vunpack.c.l.b16 %v76
    %v174 = vunpack.c.h.b16 %v76
    %v175 = vunpack.c.l.b16 %v77
    %v176 = vunpack.c.h.b16 %v77
    %v177 = vunpack.c.l.b16 %v78
    %v178 = vunpack.c.h.b16 %v78
    %v179 = vunpack.c.l.b16 %v79
    %v180 = vunpack.c.h.b16 %v79
    %v181 = vunpack.c.l.b16 %v80
    %v182 = vunpack.c.h.b16 %v80
    %v183 = vunpack.c.l.b16 %v81
    %v184 = vunpack.c.h.b16 %v81
    %v185 = vunpack.c.l.b16 %v82
    %v186 = vunpack.c.h.b16 %v82
    %v187 = vunpack.c.l.b16 %v83
    %v188 = vunpack.c.h.b16 %v83
    %v189 = vunpack.c.l.b16 %v84
    %v190 = vunpack.c.h.b16 %v84
    %v191 = vunpack.c.l.b16 %v85
    %v192 = vunpack.c.h.b16 %v85
    %v193 = vunpack.c.l.b16 %v86
    %v194 = vunpack.c.h.b16 %v86
    %v195 = vunpack.c.l.b16 %v87
    %v196 = vunpack.c.h.b16 %v87
    %v197 = vunpack.c.l.b16 %v88
    %v198 = vunpack.c.h.b16 %v88
    %v199 = vunpack.c.l.b16 %v89
    %v200 = vunpack.c.h.b16 %v89
    %v201 = vunpack.c.l.b16 %v90
    %v202 = vunpack.c.h.b16 %v90
    %v203 = vunpack.c.l.b16 %v91
    %v204 = vunpack.c.h.b16 %v91
    %v205 = vunpack.c.l.b16 %v92
    %v206 = vunpack.c.h.b16 %v92
    %v207 = vunpack.c.l.b16 %v93
    %v208 = vunpack.c.h.b16 %v93
    %v209 = vunpack.c.l.b16 %v94
    %v210 = vunpack.c.h.b16 %v94
    %v211 = vunpack.c.l.b16 %v95
    %v212 = vunpack.c.h.b16 %v95
    %v213 = vunpack.c.l.b16 %v96
    %v214 = vunpack.c.h.b16 %v96
    %v215 = vunpack.c.l.b16 %v97
    %v216 = vunpack.c.h.b16 %v97
    %v217 = vunpack.c.l.b16 %v98
    %v218 = vunpack.c.h.b16 %v98
    %v219 = vunpack.c.l.b16 %v99
    %v220 = vunpack.c.h.b16 %v99
    %v221 = vunpack.c.l.b16 %v100
    %v222 = vunpack.c.h.b16 %v100
    %v223 = vunpack.c.l.b16 %v101
    %v224 = vunpack.c.h.b16 %v101
    %v225 = vunpack.c.l.b16 %v102
    %v226 = vunpack.c.h.b16 %v102
    %v227 = vunpack.c.l.b16 %v103
    %v228 = vunpack.c.h.b16 %v103
    %v229 = vunpack.c.l.b16 %v104
    %v230 = vunpack.c.h.b16 %v104
    %v231 = vunpack.c.l.b16 %v105
    %v232 = vunpack.c.h.b16 %v105
    %v233 = vunpack.c.l.b16 %v106
    %v234 = vunpack.c.h.b16 %v106
    %v235 = vpack.c.b16 %v175, %v171
    %v236 = vpack.c.b16 %v176, %v172
    %v237 = vpack.c.b16 %v177, %v173
    %v238 = vpack.c.b16 %v178, %v174
    %v239 = vpack.c.b16 %v183, %v179
    %v240 = vpack.c.b16 %v184, %v180
    %v241 = vpack.c.b16 %v185, %v181
    %v242 = vpack.c.b16 %v186, %v182
    %v243 = vpack.c.b16 %v191, %v187
    %v244 = vpack.c.b16 %v192, %v188
    %v245 = vpack.c.b16 %v193, %v189
    %v246 = vpack.c.b16 %v194, %v190
    %v247 = vpack.c.b16 %v199, %v195
    %v248 = vpack.c.b16 %v200, %v196
    %v249 = vpack.c.b16 %v201, %v197
    %v250 = vpack.c.b16 %v202, %v198
    %v251 = vpack.c.b16 %v207, %v203
    %v252 = vpack.c.b16 %v208, %v204
    %v253 = vpack.c.b16 %v209, %v205
    %v254 = vpack.c.b16 %v210, %v206
    %v255 = vpack.c.b16 %v215, %v211
    %v256 = vpack.c.b16 %v216, %v212
    %v257 = vpack.c.b16 %v217, %v213
    %v258 = vpack.c.b16 %v218, %v214
    %v259 = vpack.c.b16 %v223, %v219
    %v260 = vpack.c.b16 %v224, %v220
    %v261 = vpack.c.b16 %v225, %v221
    %v262 = vpack.c.b16 %v226, %v222
    %v263 = vpack.c.b16 %v231, %v227
    %v264 = vpack.c.b16 %v232, %v228
    %v265 = vpack.c.b16 %v233, %v229
    %v266 = vpack.c.b16 %v234, %v230
    %299 = vmatprep.subr.bf16.mxu0 %v236
    %300 = vmatpush1.bf16.msra.mxu0 %v235
    %301 = vmatprep.subr.bf16.mxu0 %v240
    %302 = vmatpush1.bf16.msra.mxu0 %v239
    %303 = vmatprep.subr.bf16.mxu0 %v244
    %304 = vmatpush1.bf16.msra.mxu0 %v243
    %305 = vmatprep.subr.bf16.mxu0 %v248
    %306 = vmatpush1.bf16.msra.mxu0 %v247
    %307 = vmatprep.subr.bf16.mxu0 %v252
    %308 = vmatpush1.bf16.msra.mxu0 %v251
    %309 = vmatprep.subr.bf16.mxu0 %v256
    %310 = vmatpush1.bf16.msra.mxu0 %v255
    %311 = vmatprep.subr.bf16.mxu0 %v260
    %312 = vmatpush1.bf16.msra.mxu0 %v259
    %313 = vmatprep.subr.bf16.mxu0 %v264
    %314 = vmatpush1.bf16.msra.mxu0 %v263
    %315 = vmatprep.subr.bf16.mxu0 0
    %316 = vmatpush1.bf16.msra.mxu0 0
    %317 = vmatprep.subr.bf16.mxu0 0
    %318 = vmatpush1.bf16.msra.mxu0 0
    %319 = vmatprep.subr.bf16.mxu0 0
    %320 = vmatpush1.bf16.msra.mxu0 0
    %321 = vmatprep.subr.bf16.mxu0 0
    %322 = vmatpush1.bf16.msra.mxu0 0
    %323 = vmatprep.subr.bf16.mxu0 0
    %324 = vmatpush1.bf16.msra.mxu0 0
    %325 = vmatprep.subr.bf16.mxu0 0
    %326 = vmatpush1.bf16.msra.mxu0 0
    %327 = vmatprep.subr.bf16.mxu0 0
    %328 = vmatpush1.bf16.msra.mxu0 0
    %329 = vmatprep.subr.bf16.mxu0 0
    %330 = vmatpush1.bf16.msra.mxu0 0
    %331 = vmatprep.mubr.bf16.mxu0 0
    %332 = vmatmul.mubr.bf16.gmra.mrb[0].mxu0 0
    %v333 = vpop.f32.mrb[0].mxu0
    %v334 = vadd.f32 0.0, %v333
    %v335 = vpop.f32.mrb[0].mxu0
    %v336 = vadd.f32 0.0, %v335
    %v337 = vpop.f32.mrb[0].mxu0
    %v338 = vpop.f32.mrb[0].mxu0
    %339 = vdwg.mxu0
    %340 = vmatprep.subr.bf16.mxu0 %v238
    %341 = vmatpush1.bf16.msra.mxu0 %v237
    %342 = vmatprep.subr.bf16.mxu0 %v242
    %343 = vmatpush1.bf16.msra.mxu0 %v241
    %344 = vmatprep.subr.bf16.mxu0 %v246
    %345 = vmatpush1.bf16.msra.mxu0 %v245
    %346 = vmatprep.subr.bf16.mxu0 %v250
    %347 = vmatpush1.bf16.msra.mxu0 %v249
    %348 = vmatprep.subr.bf16.mxu0 %v254
    %349 = vmatpush1.bf16.msra.mxu0 %v253
    %350 = vmatprep.subr.bf16.mxu0 %v258
    %351 = vmatpush1.bf16.msra.mxu0 %v257
    %352 = vmatprep.subr.bf16.mxu0 %v262
    %353 = vmatpush1.bf16.msra.mxu0 %v261
    %354 = vmatprep.subr.bf16.mxu0 %v266
    %355 = vmatpush1.bf16.msra.mxu0 %v265
    %356 = vmatprep.subr.bf16.mxu0 0
    %357 = vmatpush1.bf16.msra.mxu0 0
    %358 = vmatprep.subr.bf16.mxu0 0
    %359 = vmatpush1.bf16.msra.mxu0 0
    %360 = vmatprep.subr.bf16.mxu0 0
    %361 = vmatpush1.bf16.msra.mxu0 0
    %362 = vmatprep.subr.bf16.mxu0 0
    %363 = vmatpush1.bf16.msra.mxu0 0
    %364 = vmatprep.subr.bf16.mxu0 0
    %365 = vmatpush1.bf16.msra.mxu0 0
    %366 = vmatprep.subr.bf16.mxu0 0
    %367 = vmatpush1.bf16.msra.mxu0 0
    %368 = vmatprep.subr.bf16.mxu0 0
    %369 = vmatpush1.bf16.msra.mxu0 0
    %370 = vmatprep.subr.bf16.mxu0 0
    %371 = vmatpush1.bf16.msra.mxu0 0
    %372 = vmatprep.mubr.bf16.mxu0 0
    %373 = vmatmul.mubr.bf16.gmra.mrb[0].mxu0 0
    %v374 = vpop.f32.mrb[0].mxu0
    %v375 = vadd.f32 0.0, %v374
    %v376 = vpop.f32.mrb[0].mxu0
    %v377 = vadd.f32 0.0, %v376
    %v378 = vpop.f32.mrb[0].mxu0
    %v379 = vpop.f32.mrb[0].mxu0
    %380 = vdwg.mxu0
    %v381 = vadd.f32 %v135, %v334
    %v382 = vadd.f32 %v136, %v336
    %v383 = vadd.f32 %v137, %v375
    %v384 = vadd.f32 %v138, %v377
    %v385 = vxor.u32 %v381, 2147483648
    %v386 = vmul.f32 %v385, 1.442695
    %v387 = vpow.pop %v386
    %v388 = vadd.f32 %v387, 1.0
    %v389 = vrcp.pop %v388
    %v390 = vmul.f32 1.0, %v389
    %v391 = vxor.u32 %v382, 2147483648
    %v392 = vmul.f32 %v391, 1.442695
    %v393 = vpow.pop %v392
    %v394 = vadd.f32 %v393, 1.0
    %v395 = vrcp.pop %v394
    %v396 = vmul.f32 1.0, %v395
    %v397 = vtanh.pop %v383
    %v398 = vxor.u32 %v384, 2147483648
    %v399 = vmul.f32 %v398, 1.442695
    %v400 = vpow.pop %v399
    %v401 = vadd.f32 %v400, 1.0
    %v402 = vrcp.pop %v401
    %v403 = vmul.f32 1.0, %v402
    %v404 = vmul.f32 %v396, 0.0
    %v405 = vmul.f32 %v390, %v397
    %v406 = vadd.f32 %v404, %v405
    %v407 = vtanh.pop %v406
    %v408 = vmul.f32 %v403, %v407
    %s409 = scalar_lea.vmem [#allocation2], 16
    %v410 = vld [vmem:[%s409] sm:$0xff]
    %v411 = vld [vmem:[%s409 + $0x8] sm:$0xff]
    %v412 = vunpack.c.l.bf16 %v410
    %v413 = vunpack.c.h.bf16 %v410
    %v414 = vunpack.c.l.bf16 %v411
    %v415 = vunpack.c.h.bf16 %v411
    %v416 = vadd.f32 %v412, %v118
    %v417 = vadd.f32 %v413, %v122
    %v418 = vadd.f32 %v414, %v126
    %v419 = vadd.f32 %v415, %v130
    %v420 = vpack.c.bf16 %v408, %v408
    %421 = vmatprep.subr.bf16.mxu0 %v236
    %422 = vmatpush1.bf16.msra.mxu0 %v235
    %423 = vmatprep.subr.bf16.mxu0 %v240
    %424 = vmatpush1.bf16.msra.mxu0 %v239
    %425 = vmatprep.subr.bf16.mxu0 %v244
    %426 = vmatpush1.bf16.msra.mxu0 %v243
    %427 = vmatprep.subr.bf16.mxu0 %v248
    %428 = vmatpush1.bf16.msra.mxu0 %v247
    %429 = vmatprep.subr.bf16.mxu0 %v252
    %430 = vmatpush1.bf16.msra.mxu0 %v251
    %431 = vmatprep.subr.bf16.mxu0 %v256
    %432 = vmatpush1.bf16.msra.mxu0 %v255
    %433 = vmatprep.subr.bf16.mxu0 %v260
    %434 = vmatpush1.bf16.msra.mxu0 %v259
    %435 = vmatprep.subr.bf16.mxu0 %v264
    %436 = vmatpush1.bf16.msra.mxu0 %v263
    %437 = vmatprep.subr.bf16.mxu0 0
    %438 = vmatpush1.bf16.msra.mxu0 0
    %439 = vmatprep.subr.bf16.mxu0 0
    %440 = vmatpush1.bf16.msra.mxu0 0
    %441 = vmatprep.subr.bf16.mxu0 0
    %442 = vmatpush1.bf16.msra.mxu0 0
    %443 = vmatprep.subr.bf16.mxu0 0
    %444 = vmatpush1.bf16.msra.mxu0 0
    %445 = vmatprep.subr.bf16.mxu0 0
    %446 = vmatpush1.bf16.msra.mxu0 0
    %447 = vmatprep.subr.bf16.mxu0 0
    %448 = vmatpush1.bf16.msra.mxu0 0
    %449 = vmatprep.subr.bf16.mxu0 0
    %450 = vmatpush1.bf16.msra.mxu0 0
    %451 = vmatprep.subr.bf16.mxu0 0
    %452 = vmatpush1.bf16.msra.mxu0 0
    %453 = vmatprep.mubr.bf16.mxu0 0
    %454 = vmatmul.mubr.bf16.gmra.mrb[0].mxu0 %v420
    %v455 = vpop.f32.mrb[0].mxu0
    %v456 = vadd.f32 0.0, %v455
    %v457 = vpop.f32.mrb[0].mxu0
    %v458 = vadd.f32 0.0, %v457
    %v459 = vpop.f32.mrb[0].mxu0
    %v460 = vpop.f32.mrb[0].mxu0
    %461 = vdwg.mxu0
    %462 = vmatprep.subr.bf16.mxu0 %v238
    %463 = vmatpush1.bf16.msra.mxu0 %v237
    %464 = vmatprep.subr.bf16.mxu0 %v242
    %465 = vmatpush1.bf16.msra.mxu0 %v241
    %466 = vmatprep.subr.bf16.mxu0 %v246
    %467 = vmatpush1.bf16.msra.mxu0 %v245
    %468 = vmatprep.subr.bf16.mxu0 %v250
    %469 = vmatpush1.bf16.msra.mxu0 %v249
    %470 = vmatprep.subr.bf16.mxu0 %v254
    %471 = vmatpush1.bf16.msra.mxu0 %v253
    %472 = vmatprep.subr.bf16.mxu0 %v258
    %473 = vmatpush1.bf16.msra.mxu0 %v257
    %474 = vmatprep.subr.bf16.mxu0 %v262
    %475 = vmatpush1.bf16.msra.mxu0 %v261
    %476 = vmatprep.subr.bf16.mxu0 %v266
    %477 = vmatpush1.bf16.msra.mxu0 %v265
    %478 = vmatprep.subr.bf16.mxu0 0
    %479 = vmatpush1.bf16.msra.mxu0 0
    %480 = vmatprep.subr.bf16.mxu0 0
    %481 = vmatpush1.bf16.msra.mxu0 0
    %482 = vmatprep.subr.bf16.mxu0 0
    %483 = vmatpush1.bf16.msra.mxu0 0
    %484 = vmatprep.subr.bf16.mxu0 0
    %485 = vmatpush1.bf16.msra.mxu0 0
    %486 = vmatprep.subr.bf16.mxu0 0
    %487 = vmatpush1.bf16.msra.mxu0 0
    %488 = vmatprep.subr.bf16.mxu0 0
    %489 = vmatpush1.bf16.msra.mxu0 0
    %490 = vmatprep.subr.bf16.mxu0 0
    %491 = vmatpush1.bf16.msra.mxu0 0
    %492 = vmatprep.subr.bf16.mxu0 0
    %493 = vmatpush1.bf16.msra.mxu0 0
    %494 = vmatprep.mubr.bf16.mxu0 0
    %495 = vmatmul.mubr.bf16.gmra.mrb[0].mxu0 %v420
    %v496 = vpop.f32.mrb[0].mxu0
    %v497 = vadd.f32 0.0, %v496
    %v498 = vpop.f32.mrb[0].mxu0
    %v499 = vadd.f32 0.0, %v498
    %v500 = vpop.f32.mrb[0].mxu0
    %v501 = vpop.f32.mrb[0].mxu0
    %502 = vdwg.mxu0
    %v503 = vadd.f32 %v416, %v456
    %v504 = vadd.f32 %v417, %v458
    %v505 = vadd.f32 %v418, %v497
    %v506 = vadd.f32 %v419, %v499
    %v507 = vxor.u32 %v503, 2147483648
    %v508 = vmul.f32 %v507, 1.442695
    %v509 = vpow.pop %v508
    %v510 = vadd.f32 %v509, 1.0
    %v511 = vrcp.pop %v510
    %v512 = vmul.f32 1.0, %v511
    %v513 = vxor.u32 %v504, 2147483648
    %v514 = vmul.f32 %v513, 1.442695
    %v515 = vpow.pop %v514
    %v516 = vadd.f32 %v515, 1.0
    %v517 = vrcp.pop %v516
    %v518 = vmul.f32 1.0, %v517
    %v519 = vtanh.pop %v505
    %v520 = vxor.u32 %v506, 2147483648
    %v521 = vmul.f32 %v520, 1.442695
    %v522 = vpow.pop %v521
    %v523 = vadd.f32 %v522, 1.0
    %v524 = vrcp.pop %v523
    %v525 = vmul.f32 1.0, %v524
    %v526 = vmul.f32 %v518, %v406
    %v527 = vmul.f32 %v512, %v519
    %v528 = vadd.f32 %v526, %v527
    %v529 = vtanh.pop %v528
    %v530 = vmul.f32 %v525, %v529
    %s531 = scalar_lea.vmem [#allocation2], 32
    %v532 = vld [vmem:[%s531] sm:$0xff]
    %v533 = vld [vmem:[%s531 + $0x8] sm:$0xff]
    %v534 = vunpack.c.l.bf16 %v532
    %v535 = vunpack.c.h.bf16 %v532
    %v536 = vunpack.c.l.bf16 %v533
    %v537 = vunpack.c.h.bf16 %v533
    %v538 = vadd.f32 %v534, %v118
    %v539 = vadd.f32 %v535, %v122
    %v540 = vadd.f32 %v536, %v126
    %v541 = vadd.f32 %v537, %v130
    %v542 = vpack.c.bf16 %v530, %v530
    %543 = vmatprep.subr.bf16.mxu0 %v236
    %544 = vmatpush1.bf16.msra.mxu0 %v235
    %545 = vmatprep.subr.bf16.mxu0 %v240
    %546 = vmatpush1.bf16.msra.mxu0 %v239
    %547 = vmatprep.subr.bf16.mxu0 %v244
    %548 = vmatpush1.bf16.msra.mxu0 %v243
    %549 = vmatprep.subr.bf16.mxu0 %v248
    %550 = vmatpush1.bf16.msra.mxu0 %v247
    %551 = vmatprep.subr.bf16.mxu0 %v252
    %552 = vmatpush1.bf16.msra.mxu0 %v251
    %553 = vmatprep.subr.bf16.mxu0 %v256
    %554 = vmatpush1.bf16.msra.mxu0 %v255
    %555 = vmatprep.subr.bf16.mxu0 %v260
    %556 = vmatpush1.bf16.msra.mxu0 %v259
    %557 = vmatprep.subr.bf16.mxu0 %v264
    %558 = vmatpush1.bf16.msra.mxu0 %v263
    %559 = vmatprep.subr.bf16.mxu0 0
    %560 = vmatpush1.bf16.msra.mxu0 0
    %561 = vmatprep.subr.bf16.mxu0 0
    %562 = vmatpush1.bf16.msra.mxu0 0
    %563 = vmatprep.subr.bf16.mxu0 0
    %564 = vmatpush1.bf16.msra.mxu0 0
    %565 = vmatprep.subr.bf16.mxu0 0
    %566 = vmatpush1.bf16.msra.mxu0 0
    %567 = vmatprep.subr.bf16.mxu0 0
    %568 = vmatpush1.bf16.msra.mxu0 0
    %569 = vmatprep.subr.bf16.mxu0 0
    %570 = vmatpush1.bf16.msra.mxu0 0
    %571 = vmatprep.subr.bf16.mxu0 0
    %572 = vmatpush1.bf16.msra.mxu0 0
    %573 = vmatprep.subr.bf16.mxu0 0
    %574 = vmatpush1.bf16.msra.mxu0 0
    %575 = vmatprep.mubr.bf16.mxu0 0
    %576 = vmatmul.mubr.bf16.gmra.mrb[0].mxu0 %v542
    %v577 = vpop.f32.mrb[0].mxu0
    %v578 = vadd.f32 0.0, %v577
    %v579 = vpop.f32.mrb[0].mxu0
    %v580 = vadd.f32 0.0, %v579
    %v581 = vpop.f32.mrb[0].mxu0
    %v582 = vpop.f32.mrb[0].mxu0
    %583 = vdwg.mxu0
    %584 = vmatprep.subr.bf16.mxu0 %v238
    %585 = vmatpush1.bf16.msra.mxu0 %v237
    %586 = vmatprep.subr.bf16.mxu0 %v242
    %587 = vmatpush1.bf16.msra.mxu0 %v241
    %588 = vmatprep.subr.bf16.mxu0 %v246
    %589 = vmatpush1.bf16.msra.mxu0 %v245
    %590 = vmatprep.subr.bf16.mxu0 %v250
    %591 = vmatpush1.bf16.msra.mxu0 %v249
    %592 = vmatprep.subr.bf16.mxu0 %v254
    %593 = vmatpush1.bf16.msra.mxu0 %v253
    %594 = vmatprep.subr.bf16.mxu0 %v258
    %595 = vmatpush1.bf16.msra.mxu0 %v257
    %596 = vmatprep.subr.bf16.mxu0 %v262
    %597 = vmatpush1.bf16.msra.mxu0 %v261
    %598 = vmatprep.subr.bf16.mxu0 %v266
    %599 = vmatpush1.bf16.msra.mxu0 %v265
    %600 = vmatprep.subr.bf16.mxu0 0
    %601 = vmatpush1.bf16.msra.mxu0 0
    %602 = vmatprep.subr.bf16.mxu0 0
    %603 = vmatpush1.bf16.msra.mxu0 0
    %604 = vmatprep.subr.bf16.mxu0 0
    %605 = vmatpush1.bf16.msra.mxu0 0
    %606 = vmatprep.subr.bf16.mxu0 0
    %607 = vmatpush1.bf16.msra.mxu0 0
    %608 = vmatprep.subr.bf16.mxu0 0
    %609 = vmatpush1.bf16.msra.mxu0 0
    %610 = vmatprep.subr.bf16.mxu0 0
    %611 = vmatpush1.bf16.msra.mxu0 0
    %612 = vmatprep.subr.bf16.mxu0 0
    %613 = vmatpush1.bf16.msra.mxu0 0
    %614 = vmatprep.subr.bf16.mxu0 0
    %615 = vmatpush1.bf16.msra.mxu0 0
    %616 = vmatprep.mubr.bf16.mxu0 0
    %617 = vmatmul.mubr.bf16.gmra.mrb[0].mxu0 %v542
    %v618 = vpop.f32.mrb[0].mxu0
    %v619 = vadd.f32 0.0, %v618
    %v620 = vpop.f32.mrb[0].mxu0
    %v621 = vadd.f32 0.0, %v620
    %v622 = vpop.f32.mrb[0].mxu0
    %v623 = vpop.f32.mrb[0].mxu0
    %624 = vdwg.mxu0
    %v625 = vadd.f32 %v538, %v578
    %v626 = vadd.f32 %v539, %v580
    %v627 = vadd.f32 %v540, %v619
    %v628 = vadd.f32 %v541, %v621
    %v629 = vxor.u32 %v625, 2147483648
    %v630 = vmul.f32 %v629, 1.442695
    %v631 = vpow.pop %v630
    %v632 = vadd.f32 %v631, 1.0
    %v633 = vrcp.pop %v632
    %v634 = vmul.f32 1.0, %v633
    %v635 = vxor.u32 %v626, 2147483648
    %v636 = vmul.f32 %v635, 1.442695
    %v637 = vpow.pop %v636
    %v638 = vadd.f32 %v637, 1.0
    %v639 = vrcp.pop %v638
    %v640 = vmul.f32 1.0, %v639
    %v641 = vtanh.pop %v627
    %v642 = vxor.u32 %v628, 2147483648
    %v643 = vmul.f32 %v642, 1.442695
    %v644 = vpow.pop %v643
    %v645 = vadd.f32 %v644, 1.0
    %v646 = vrcp.pop %v645
    %v647 = vmul.f32 1.0, %v646
    %v648 = vmul.f32 %v640, %v528
    %v649 = vmul.f32 %v634, %v641
    %v650 = vadd.f32 %v648, %v649
    %v651 = vtanh.pop %v650
    %v652 = vmul.f32 %v647, %v651
    %s653 = scalar_lea.vmem [#allocation2], 48
    %v654 = vld [vmem:[%s653] sm:$0xff]
    %v655 = vld [vmem:[%s653 + $0x8] sm:$0xff]
    %v656 = vunpack.c.l.bf16 %v654
    %v657 = vunpack.c.h.bf16 %v654
    %v658 = vunpack.c.l.bf16 %v655
    %v659 = vunpack.c.h.bf16 %v655
    %v660 = vadd.f32 %v656, %v118
    %v661 = vadd.f32 %v657, %v122
    %v662 = vadd.f32 %v658, %v126
    %v663 = vadd.f32 %v659, %v130
    %v664 = vpack.c.bf16 %v652, %v652
    %665 = vmatprep.subr.bf16.mxu0 %v236
    %666 = vmatpush1.bf16.msra.mxu0 %v235
    %667 = vmatprep.subr.bf16.mxu0 %v240
    %668 = vmatpush1.bf16.msra.mxu0 %v239
    %669 = vmatprep.subr.bf16.mxu0 %v244
    %670 = vmatpush1.bf16.msra.mxu0 %v243
    %671 = vmatprep.subr.bf16.mxu0 %v248
    %672 = vmatpush1.bf16.msra.mxu0 %v247
    %673 = vmatprep.subr.bf16.mxu0 %v252
    %674 = vmatpush1.bf16.msra.mxu0 %v251
    %675 = vmatprep.subr.bf16.mxu0 %v256
    %676 = vmatpush1.bf16.msra.mxu0 %v255
    %677 = vmatprep.subr.bf16.mxu0 %v260
    %678 = vmatpush1.bf16.msra.mxu0 %v259
    %679 = vmatprep.subr.bf16.mxu0 %v264
    %680 = vmatpush1.bf16.msra.mxu0 %v263
    %681 = vmatprep.subr.bf16.mxu0 0
    %682 = vmatpush1.bf16.msra.mxu0 0
    %683 = vmatprep.subr.bf16.mxu0 0
    %684 = vmatpush1.bf16.msra.mxu0 0
    %685 = vmatprep.subr.bf16.mxu0 0
    %686 = vmatpush1.bf16.msra.mxu0 0
    %687 = vmatprep.subr.bf16.mxu0 0
    %688 = vmatpush1.bf16.msra.mxu0 0
    %689 = vmatprep.subr.bf16.mxu0 0
    %690 = vmatpush1.bf16.msra.mxu0 0
    %691 = vmatprep.subr.bf16.mxu0 0
    %692 = vmatpush1.bf16.msra.mxu0 0
    %693 = vmatprep.subr.bf16.mxu0 0
    %694 = vmatpush1.bf16.msra.mxu0 0
    %695 = vmatprep.subr.bf16.mxu0 0
    %696 = vmatpush1.bf16.msra.mxu0 0
    %697 = vmatprep.mubr.bf16.mxu0 0
    %698 = vmatmul.mubr.bf16.gmra.mrb[0].mxu0 %v664
    %v699 = vpop.f32.mrb[0].mxu0
    %v700 = vadd.f32 0.0, %v699
    %v701 = vpop.f32.mrb[0].mxu0
    %v702 = vadd.f32 0.0, %v701
    %v703 = vpop.f32.mrb[0].mxu0
    %v704 = vpop.f32.mrb[0].mxu0
    %705 = vdwg.mxu0
    %706 = vmatprep.subr.bf16.mxu0 %v238
    %707 = vmatpush1.bf16.msra.mxu0 %v237
    %708 = vmatprep.subr.bf16.mxu0 %v242
    %709 = vmatpush1.bf16.msra.mxu0 %v241
    %710 = vmatprep.subr.bf16.mxu0 %v246
    %711 = vmatpush1.bf16.msra.mxu0 %v245
    %712 = vmatprep.subr.bf16.mxu0 %v250
    %713 = vmatpush1.bf16.msra.mxu0 %v249
    %714 = vmatprep.subr.bf16.mxu0 %v254
    %715 = vmatpush1.bf16.msra.mxu0 %v253
    %716 = vmatprep.subr.bf16.mxu0 %v258
    %717 = vmatpush1.bf16.msra.mxu0 %v257
    %718 = vmatprep.subr.bf16.mxu0 %v262
    %719 = vmatpush1.bf16.msra.mxu0 %v261
    %720 = vmatprep.subr.bf16.mxu0 %v266
    %721 = vmatpush1.bf16.msra.mxu0 %v265
    %722 = vmatprep.subr.bf16.mxu0 0
    %723 = vmatpush1.bf16.msra.mxu0 0
    %724 = vmatprep.subr.bf16.mxu0 0
    %725 = vmatpush1.bf16.msra.mxu0 0
    %726 = vmatprep.subr.bf16.mxu0 0
    %727 = vmatpush1.bf16.msra.mxu0 0
    %728 = vmatprep.subr.bf16.mxu0 0
    %729 = vmatpush1.bf16.msra.mxu0 0
    %730 = vmatprep.subr.bf16.mxu0 0
    %731 = vmatpush1.bf16.msra.mxu0 0
    %732 = vmatprep.subr.bf16.mxu0 0
    %733 = vmatpush1.bf16.msra.mxu0 0
    %734 = vmatprep.subr.bf16.mxu0 0
    %735 = vmatpush1.bf16.msra.mxu0 0
    %736 = vmatprep.subr.bf16.mxu0 0
    %737 = vmatpush1.bf16.msra.mxu0 0
    %738 = vmatprep.mubr.bf16.mxu0 0
    %739 = vmatmul.mubr.bf16.gmra.mrb[0].mxu0 %v664
    %v740 = vpop.f32.mrb[0].mxu0
    %v741 = vadd.f32 0.0, %v740
    %v742 = vpop.f32.mrb[0].mxu0
    %v743 = vadd.f32 0.0, %v742
    %v744 = vpop.f32.mrb[0].mxu0
    %v745 = vpop.f32.mrb[0].mxu0
    %746 = vdwg.mxu0
    %v747 = vadd.f32 %v660, %v700
    %v748 = vadd.f32 %v661, %v702
    %v749 = vadd.f32 %v662, %v741
    %v750 = vadd.f32 %v663, %v743
    %v751 = vxor.u32 %v747, 2147483648
    %v752 = vmul.f32 %v751, 1.442695
    %v753 = vpow.pop %v752
    %v754 = vadd.f32 %v753, 1.0
    %v755 = vrcp.pop %v754
    %v756 = vmul.f32 1.0, %v755
    %v757 = vxor.u32 %v748, 2147483648
    %v758 = vmul.f32 %v757, 1.442695
    %v759 = vpow.pop %v758
    %v760 = vadd.f32 %v759, 1.0
    %v761 = vrcp.pop %v760
    %v762 = vmul.f32 1.0, %v761
    %v763 = vtanh.pop %v749
    %v764 = vxor.u32 %v750, 2147483648
    %v765 = vmul.f32 %v764, 1.442695
    %v766 = vpow.pop %v765
    %v767 = vadd.f32 %v766, 1.0
    %v768 = vrcp.pop %v767
    %v769 = vmul.f32 1.0, %v768
    %v770 = vmul.f32 %v762, %v650
    %v771 = vmul.f32 %v756, %v763
    %v772 = vadd.f32 %v770, %v771
    %v773 = vtanh.pop %v772
    %v774 = vmul.f32 %v769, %v773
    %s775 = scalar_lea.vmem [#allocation2], 64
    %v776 = vld [vmem:[%s775] sm:$0xff]
    %v777 = vld [vmem:[%s775 + $0x8] sm:$0xff]
    %v778 = vunpack.c.l.bf16 %v776
    %v779 = vunpack.c.h.bf16 %v776
    %v780 = vunpack.c.l.bf16 %v777
    %v781 = vunpack.c.h.bf16 %v777
    %v782 = vadd.f32 %v778, %v118
    %v783 = vadd.f32 %v779, %v122
    %v784 = vadd.f32 %v780, %v126
    %v785 = vadd.f32 %v781, %v130
    %v786 = vpack.c.bf16 %v774, %v774
    %787 = vmatprep.subr.bf16.mxu0 %v236
    %788 = vmatpush1.bf16.msra.mxu0 %v235
    %789 = vmatprep.subr.bf16.mxu0 %v240
    %790 = vmatpush1.bf16.msra.mxu0 %v239
    %791 = vmatprep.subr.bf16.mxu0 %v244
    %792 = vmatpush1.bf16.msra.mxu0 %v243
    %793 = vmatprep.subr.bf16.mxu0 %v248
    %794 = vmatpush1.bf16.msra.mxu0 %v247
    %795 = vmatprep.subr.bf16.mxu0 %v252
    %796 = vmatpush1.bf16.msra.mxu0 %v251
    %797 = vmatprep.subr.bf16.mxu0 %v256
    %798 = vmatpush1.bf16.msra.mxu0 %v255
    %799 = vmatprep.subr.bf16.mxu0 %v260
    %800 = vmatpush1.bf16.msra.mxu0 %v259
    %801 = vmatprep.subr.bf16.mxu0 %v264
    %802 = vmatpush1.bf16.msra.mxu0 %v263
    %803 = vmatprep.subr.bf16.mxu0 0
    %804 = vmatpush1.bf16.msra.mxu0 0
    %805 = vmatprep.subr.bf16.mxu0 0
    %806 = vmatpush1.bf16.msra.mxu0 0
    %807 = vmatprep.subr.bf16.mxu0 0
    %808 = vmatpush1.bf16.msra.mxu0 0
    %809 = vmatprep.subr.bf16.mxu0 0
    %810 = vmatpush1.bf16.msra.mxu0 0
    %811 = vmatprep.subr.bf16.mxu0 0
    %812 = vmatpush1.bf16.msra.mxu0 0
    %813 = vmatprep.subr.bf16.mxu0 0
    %814 = vmatpush1.bf16.msra.mxu0 0
    %815 = vmatprep.subr.bf16.mxu0 0
    %816 = vmatpush1.bf16.msra.mxu0 0
    %817 = vmatprep.subr.bf16.mxu0 0
    %818 = vmatpush1.bf16.msra.mxu0 0
    %819 = vmatprep.mubr.bf16.mxu0 0
    %820 = vmatmul.mubr.bf16.gmra.mrb[0].mxu0 %v786
    %v821 = vpop.f32.mrb[0].mxu0
    %v822 = vadd.f32 0.0, %v821
    %v823 = vpop.f32.mrb[0].mxu0
    %v824 = vadd.f32 0.0, %v823
    %v825 = vpop.f32.mrb[0].mxu0
    %v826 = vpop.f32.mrb[0].mxu0
    %827 = vdwg.mxu0
    %828 = vmatprep.subr.bf16.mxu0 %v238
    %829 = vmatpush1.bf16.msra.mxu0 %v237
    %830 = vmatprep.subr.bf16.mxu0 %v242
    %831 = vmatpush1.bf16.msra.mxu0 %v241
    %832 = vmatprep.subr.bf16.mxu0 %v246
    %833 = vmatpush1.bf16.msra.mxu0 %v245
    %834 = vmatprep.subr.bf16.mxu0 %v250
    %835 = vmatpush1.bf16.msra.mxu0 %v249
    %836 = vmatprep.subr.bf16.mxu0 %v254
    %837 = vmatpush1.bf16.msra.mxu0 %v253
    %838 = vmatprep.subr.bf16.mxu0 %v258
    %839 = vmatpush1.bf16.msra.mxu0 %v257
    %840 = vmatprep.subr.bf16.mxu0 %v262
    %841 = vmatpush1.bf16.msra.mxu0 %v261
    %842 = vmatprep.subr.bf16.mxu0 %v266
    %843 = vmatpush1.bf16.msra.mxu0 %v265
    %844 = vmatprep.subr.bf16.mxu0 0
    %845 = vmatpush1.bf16.msra.mxu0 0
    %846 = vmatprep.subr.bf16.mxu0 0
    %847 = vmatpush1.bf16.msra.mxu0 0
    %848 = vmatprep.subr.bf16.mxu0 0
    %849 = vmatpush1.bf16.msra.mxu0 0
    %850 = vmatprep.subr.bf16.mxu0 0
    %851 = vmatpush1.bf16.msra.mxu0 0
    %852 = vmatprep.subr.bf16.mxu0 0
    %853 = vmatpush1.bf16.msra.mxu0 0
    %854 = vmatprep.subr.bf16.mxu0 0
    %855 = vmatpush1.bf16.msra.mxu0 0
    %856 = vmatprep.subr.bf16.mxu0 0
    %857 = vmatpush1.bf16.msra.mxu0 0
    %858 = vmatprep.subr.bf16.mxu0 0
    %859 = vmatpush1.bf16.msra.mxu0 0
    %860 = vmatprep.mubr.bf16.mxu0 0
    %861 = vmatmul.mubr.bf16.gmra.mrb[0].mxu0 %v786
    %v862 = vpop.f32.mrb[0].mxu0
    %v863 = vadd.f32 0.0, %v862
    %v864 = vpop.f32.mrb[0].mxu0
    %v865 = vadd.f32 0.0, %v864
    %v866 = vpop.f32.mrb[0].mxu0
    %v867 = vpop.f32.mrb[0].mxu0
    %868 = vdwg.mxu0
    %v869 = vadd.f32 %v782, %v822
    %v870 = vadd.f32 %v783, %v824
    %v871 = vadd.f32 %v784, %v863
    %v872 = vadd.f32 %v785, %v865
    %v873 = vxor.u32 %v869, 2147483648
    %v874 = vmul.f32 %v873, 1.442695
    %v875 = vpow.pop %v874
    %v876 = vadd.f32 %v875, 1.0
    %v877 = vrcp.pop %v876
    %v878 = vmul.f32 1.0, %v877
    %v879 = vxor.u32 %v870, 2147483648
    %v880 = vmul.f32 %v879, 1.442695
    %v881 = vpow.pop %v880
    %v882 = vadd.f32 %v881, 1.0
    %v883 = vrcp.pop %v882
    %v884 = vmul.f32 1.0, %v883
    %v885 = vtanh.pop %v871
    %v886 = vxor.u32 %v872, 2147483648
    %v887 = vmul.f32 %v886, 1.442695
    %v888 = vpow.pop %v887
    %v889 = vadd.f32 %v888, 1.0
    %v890 = vrcp.pop %v889
    %v891 = vmul.f32 1.0, %v890
    %v892 = vmul.f32 %v884, %v772
    %v893 = vmul.f32 %v878, %v885
    %v894 = vadd.f32 %v892, %v893
    %v895 = vtanh.pop %v894
    %v896 = vmul.f32 %v891, %v895
    %s897 = scalar_lea.vmem [#allocation2], 80
    %v898 = vld [vmem:[%s897] sm:$0xff]
    %v899 = vld [vmem:[%s897 + $0x8] sm:$0xff]
    %v900 = vunpack.c.l.bf16 %v898
    %v901 = vunpack.c.h.bf16 %v898
    %v902 = vunpack.c.l.bf16 %v899
    %v903 = vunpack.c.h.bf16 %v899
    %v904 = vadd.f32 %v900, %v118
    %v905 = vadd.f32 %v901, %v122
    %v906 = vadd.f32 %v902, %v126
    %v907 = vadd.f32 %v903, %v130
    %v908 = vpack.c.bf16 %v896, %v896
    %909 = vmatprep.subr.bf16.mxu0 %v236
    %910 = vmatpush1.bf16.msra.mxu0 %v235
    %911 = vmatprep.subr.bf16.mxu0 %v240
    %912 = vmatpush1.bf16.msra.mxu0 %v239
    %913 = vmatprep.subr.bf16.mxu0 %v244
    %914 = vmatpush1.bf16.msra.mxu0 %v243
    %915 = vmatprep.subr.bf16.mxu0 %v248
    %916 = vmatpush1.bf16.msra.mxu0 %v247
    %917 = vmatprep.subr.bf16.mxu0 %v252
    %918 = vmatpush1.bf16.msra.mxu0 %v251
    %919 = vmatprep.subr.bf16.mxu0 %v256
    %920 = vmatpush1.bf16.msra.mxu0 %v255
    %921 = vmatprep.subr.bf16.mxu0 %v260
    %922 = vmatpush1.bf16.msra.mxu0 %v259
    %923 = vmatprep.subr.bf16.mxu0 %v264
    %924 = vmatpush1.bf16.msra.mxu0 %v263
    %925 = vmatprep.subr.bf16.mxu0 0
    %926 = vmatpush1.bf16.msra.mxu0 0
    %927 = vmatprep.subr.bf16.mxu0 0
    %928 = vmatpush1.bf16.msra.mxu0 0
    %929 = vmatprep.subr.bf16.mxu0 0
    %930 = vmatpush1.bf16.msra.mxu0 0
    %931 = vmatprep.subr.bf16.mxu0 0
    %932 = vmatpush1.bf16.msra.mxu0 0
    %933 = vmatprep.subr.bf16.mxu0 0
    %934 = vmatpush1.bf16.msra.mxu0 0
    %935 = vmatprep.subr.bf16.mxu0 0
    %936 = vmatpush1.bf16.msra.mxu0 0
    %937 = vmatprep.subr.bf16.mxu0 0
    %938 = vmatpush1.bf16.msra.mxu0 0
    %939 = vmatprep.subr.bf16.mxu0 0
    %940 = vmatpush1.bf16.msra.mxu0 0
    %941 = vmatprep.mubr.bf16.mxu0 0
    %942 = vmatmul.mubr.bf16.gmra.mrb[0].mxu0 %v908
    %v943 = vpop.f32.mrb[0].mxu0
    %v944 = vadd.f32 0.0, %v943
    %v945 = vpop.f32.mrb[0].mxu0
    %v946 = vadd.f32 0.0, %v945
    %v947 = vpop.f32.mrb[0].mxu0
    %v948 = vpop.f32.mrb[0].mxu0
    %949 = vdwg.mxu0
    %950 = vmatprep.subr.bf16.mxu0 %v238
    %951 = vmatpush1.bf16.msra.mxu0 %v237
    %952 = vmatprep.subr.bf16.mxu0 %v242
    %953 = vmatpush1.bf16.msra.mxu0 %v241
    %954 = vmatprep.subr.bf16.mxu0 %v246
    %955 = vmatpush1.bf16.msra.mxu0 %v245
    %956 = vmatprep.subr.bf16.mxu0 %v250
    %957 = vmatpush1.bf16.msra.mxu0 %v249
    %958 = vmatprep.subr.bf16.mxu0 %v254
    %959 = vmatpush1.bf16.msra.mxu0 %v253
    %960 = vmatprep.subr.bf16.mxu0 %v258
    %961 = vmatpush1.bf16.msra.mxu0 %v257
    %962 = vmatprep.subr.bf16.mxu0 %v262
    %963 = vmatpush1.bf16.msra.mxu0 %v261
    %964 = vmatprep.subr.bf16.mxu0 %v266
    %965 = vmatpush1.bf16.msra.mxu0 %v265
    %966 = vmatprep.subr.bf16.mxu0 0
    %967 = vmatpush1.bf16.msra.mxu0 0
    %968 = vmatprep.subr.bf16.mxu0 0
    %969 = vmatpush1.bf16.msra.mxu0 0
    %970 = vmatprep.subr.bf16.mxu0 0
    %971 = vmatpush1.bf16.msra.mxu0 0
    %972 = vmatprep.subr.bf16.mxu0 0
    %973 = vmatpush1.bf16.msra.mxu0 0
    %974 = vmatprep.subr.bf16.mxu0 0
    %975 = vmatpush1.bf16.msra.mxu0 0
    %976 = vmatprep.subr.bf16.mxu0 0
    %977 = vmatpush1.bf16.msra.mxu0 0
    %978 = vmatprep.subr.bf16.mxu0 0
    %979 = vmatpush1.bf16.msra.mxu0 0
    %980 = vmatprep.subr.bf16.mxu0 0
    %981 = vmatpush1.bf16.msra.mxu0 0
    %982 = vmatprep.mubr.bf16.mxu0 0
    %983 = vmatmul.mubr.bf16.gmra.mrb[0].mxu0 %v908
    %v984 = vpop.f32.mrb[0].mxu0
    %v985 = vadd.f32 0.0, %v984
    %v986 = vpop.f32.mrb[0].mxu0
    %v987 = vadd.f32 0.0, %v986
    %v988 = vpop.f32.mrb[0].mxu0
    %v989 = vpop.f32.mrb[0].mxu0
    %990 = vdwg.mxu0
    %v991 = vadd.f32 %v904, %v944
    %v992 = vadd.f32 %v905, %v946
    %v993 = vadd.f32 %v906, %v985
    %v994 = vadd.f32 %v907, %v987
    %v995 = vxor.u32 %v991, 2147483648
    %v996 = vmul.f32 %v995, 1.442695
    %v997 = vpow.pop %v996
    %v998 = vadd.f32 %v997, 1.0
    %v999 = vrcp.pop %v998
    %v1000 = vmul.f32 1.0, %v999
    %v1001 = vxor.u32 %v992, 2147483648
    %v1002 = vmul.f32 %v1001, 1.442695
    %v1003 = vpow.pop %v1002
    %v1004 = vadd.f32 %v1003, 1.0
    %v1005 = vrcp.pop %v1004
    %v1006 = vmul.f32 1.0, %v1005
    %v1007 = vtanh.pop %v993
    %v1008 = vxor.u32 %v994, 2147483648
    %v1009 = vmul.f32 %v1008, 1.442695
    %v1010 = vpow.pop %v1009
    %v1011 = vadd.f32 %v1010, 1.0
    %v1012 = vrcp.pop %v1011
    %v1013 = vmul.f32 1.0, %v1012
    %v1014 = vmul.f32 %v1006, %v894
    %v1015 = vmul.f32 %v1000, %v1007
    %v1016 = vadd.f32 %v1014, %v1015
    %v1017 = vtanh.pop %v1016
    %v1018 = vmul.f32 %v1013, %v1017
    %s1019 = scalar_lea.vmem [#allocation2], 96
    %v1020 = vld [vmem:[%s1019] sm:$0xff]
    %v1021 = vld [vmem:[%s1019 + $0x8] sm:$0xff]
    %v1022 = vunpack.c.l.bf16 %v1020
    %v1023 = vunpack.c.h.bf16 %v1020
    %v1024 = vunpack.c.l.bf16 %v1021
    %v1025 = vunpack.c.h.bf16 %v1021
    %v1026 = vadd.f32 %v1022, %v118
    %v1027 = vadd.f32 %v1023, %v122
    %v1028 = vadd.f32 %v1024, %v126
    %v1029 = vadd.f32 %v1025, %v130
    %v1030 = vpack.c.bf16 %v1018, %v1018
    %1031 = vmatprep.subr.bf16.mxu0 %v236
    %1032 = vmatpush1.bf16.msra.mxu0 %v235
    %1033 = vmatprep.subr.bf16.mxu0 %v240
    %1034 = vmatpush1.bf16.msra.mxu0 %v239
    %1035 = vmatprep.subr.bf16.mxu0 %v244
    %1036 = vmatpush1.bf16.msra.mxu0 %v243
    %1037 = vmatprep.subr.bf16.mxu0 %v248
    %1038 = vmatpush1.bf16.msra.mxu0 %v247
    %1039 = vmatprep.subr.bf16.mxu0 %v252
    %1040 = vmatpush1.bf16.msra.mxu0 %v251
    %1041 = vmatprep.subr.bf16.mxu0 %v256
    %1042 = vmatpush1.bf16.msra.mxu0 %v255
    %1043 = vmatprep.subr.bf16.mxu0 %v260
    %1044 = vmatpush1.bf16.msra.mxu0 %v259
    %1045 = vmatprep.subr.bf16.mxu0 %v264
    %1046 = vmatpush1.bf16.msra.mxu0 %v263
    %1047 = vmatprep.subr.bf16.mxu0 0
    %1048 = vmatpush1.bf16.msra.mxu0 0
    %1049 = vmatprep.subr.bf16.mxu0 0
    %1050 = vmatpush1.bf16.msra.mxu0 0
    %1051 = vmatprep.subr.bf16.mxu0 0
    %1052 = vmatpush1.bf16.msra.mxu0 0
    %1053 = vmatprep.subr.bf16.mxu0 0
    %1054 = vmatpush1.bf16.msra.mxu0 0
    %1055 = vmatprep.subr.bf16.mxu0 0
    %1056 = vmatpush1.bf16.msra.mxu0 0
    %1057 = vmatprep.subr.bf16.mxu0 0
    %1058 = vmatpush1.bf16.msra.mxu0 0
    %1059 = vmatprep.subr.bf16.mxu0 0
    %1060 = vmatpush1.bf16.msra.mxu0 0
    %1061 = vmatprep.subr.bf16.mxu0 0
    %1062 = vmatpush1.bf16.msra.mxu0 0
    %1063 = vmatprep.mubr.bf16.mxu0 0
    %1064 = vmatmul.mubr.bf16.gmra.mrb[0].mxu0 %v1030
    %v1065 = vpop.f32.mrb[0].mxu0
    %v1066 = vadd.f32 0.0, %v1065
    %v1067 = vpop.f32.mrb[0].mxu0
    %v1068 = vadd.f32 0.0, %v1067
    %v1069 = vpop.f32.mrb[0].mxu0
    %v1070 = vpop.f32.mrb[0].mxu0
    %1071 = vdwg.mxu0
    %1072 = vmatprep.subr.bf16.mxu0 %v238
    %1073 = vmatpush1.bf16.msra.mxu0 %v237
    %1074 = vmatprep.subr.bf16.mxu0 %v242
    %1075 = vmatpush1.bf16.msra.mxu0 %v241
    %1076 = vmatprep.subr.bf16.mxu0 %v246
    %1077 = vmatpush1.bf16.msra.mxu0 %v245
    %1078 = vmatprep.subr.bf16.mxu0 %v250
    %1079 = vmatpush1.bf16.msra.mxu0 %v249
    %1080 = vmatprep.subr.bf16.mxu0 %v254
    %1081 = vmatpush1.bf16.msra.mxu0 %v253
    %1082 = vmatprep.subr.bf16.mxu0 %v258
    %1083 = vmatpush1.bf16.msra.mxu0 %v257
    %1084 = vmatprep.subr.bf16.mxu0 %v262
    %1085 = vmatpush1.bf16.msra.mxu0 %v261
    %1086 = vmatprep.subr.bf16.mxu0 %v266
    %1087 = vmatpush1.bf16.msra.mxu0 %v265
    %1088 = vmatprep.subr.bf16.mxu0 0
    %1089 = vmatpush1.bf16.msra.mxu0 0
    %1090 = vmatprep.subr.bf16.mxu0 0
    %1091 = vmatpush1.bf16.msra.mxu0 0
    %1092 = vmatprep.subr.bf16.mxu0 0
    %1093 = vmatpush1.bf16.msra.mxu0 0
    %1094 = vmatprep.subr.bf16.mxu0 0
    %1095 = vmatpush1.bf16.msra.mxu0 0
    %1096 = vmatprep.subr.bf16.mxu0 0
    %1097 = vmatpush1.bf16.msra.mxu0 0
    %1098 = vmatprep.subr.bf16.mxu0 0
    %1099 = vmatpush1.bf16.msra.mxu0 0
    %1100 = vmatprep.subr.bf16.mxu0 0
    %1101 = vmatpush1.bf16.msra.mxu0 0
    %1102 = vmatprep.subr.bf16.mxu0 0
    %1103 = vmatpush1.bf16.msra.mxu0 0
    %1104 = vmatprep.mubr.bf16.mxu0 0
    %1105 = vmatmul.mubr.bf16.gmra.mrb[0].mxu0 %v1030
    %v1106 = vpop.f32.mrb[0].mxu0
    %v1107 = vadd.f32 0.0, %v1106
    %v1108 = vpop.f32.mrb[0].mxu0
    %v1109 = vadd.f32 0.0, %v1108
    %v1110 = vpop.f32.mrb[0].mxu0
    %v1111 = vpop.f32.mrb[0].mxu0
    %1112 = vdwg.mxu0
    %v1113 = vadd.f32 %v1026, %v1066
    %v1114 = vadd.f32 %v1027, %v1068
    %v1115 = vadd.f32 %v1028, %v1107
    %v1116 = vadd.f32 %v1029, %v1109
    %v1117 = vxor.u32 %v1113, 2147483648
    %v1118 = vmul.f32 %v1117, 1.442695
    %v1119 = vpow.pop %v1118
    %v1120 = vadd.f32 %v1119, 1.0
    %v1121 = vrcp.pop %v1120
    %v1122 = vmul.f32 1.0, %v1121
    %v1123 = vxor.u32 %v1114, 2147483648
    %v1124 = vmul.f32 %v1123, 1.442695
    %v1125 = vpow.pop %v1124
    %v1126 = vadd.f32 %v1125, 1.0
    %v1127 = vrcp.pop %v1126
    %v1128 = vmul.f32 1.0, %v1127
    %v1129 = vtanh.pop %v1115
    %v1130 = vxor.u32 %v1116, 2147483648
    %v1131 = vmul.f32 %v1130, 1.442695
    %v1132 = vpow.pop %v1131
    %v1133 = vadd.f32 %v1132, 1.0
    %v1134 = vrcp.pop %v1133
    %v1135 = vmul.f32 1.0, %v1134
    %v1136 = vmul.f32 %v1128, %v1016
    %v1137 = vmul.f32 %v1122, %v1129
    %v1138 = vadd.f32 %v1136, %v1137
    %v1139 = vtanh.pop %v1138
    %v1140 = vmul.f32 %v1135, %v1139
    %s1141 = scalar_lea.vmem [#allocation2], 112
    %v1142 = vld [vmem:[%s1141] sm:$0xff]
    %v1143 = vld [vmem:[%s1141 + $0x8] sm:$0xff]
    %v1144 = vunpack.c.l.bf16 %v1142
    %v1145 = vunpack.c.h.bf16 %v1142
    %v1146 = vunpack.c.l.bf16 %v1143
    %v1147 = vunpack.c.h.bf16 %v1143
    %v1148 = vadd.f32 %v1144, %v118
    %v1149 = vadd.f32 %v1145, %v122
    %v1150 = vadd.f32 %v1146, %v126
    %v1151 = vadd.f32 %v1147, %v130
    %v1152 = vpack.c.bf16 %v1140, %v1140
    %1153 = vmatprep.subr.bf16.mxu0 %v236
    %1154 = vmatpush1.bf16.msra.mxu0 %v235
    %1155 = vmatprep.subr.bf16.mxu0 %v240
    %1156 = vmatpush1.bf16.msra.mxu0 %v239
    %1157 = vmatprep.subr.bf16.mxu0 %v244
    %1158 = vmatpush1.bf16.msra.mxu0 %v243
    %1159 = vmatprep.subr.bf16.mxu0 %v248
    %1160 = vmatpush1.bf16.msra.mxu0 %v247
    %1161 = vmatprep.subr.bf16.mxu0 %v252
    %1162 = vmatpush1.bf16.msra.mxu0 %v251
    %1163 = vmatprep.subr.bf16.mxu0 %v256
    %1164 = vmatpush1.bf16.msra.mxu0 %v255
    %1165 = vmatprep.subr.bf16.mxu0 %v260
    %1166 = vmatpush1.bf16.msra.mxu0 %v259
    %1167 = vmatprep.subr.bf16.mxu0 %v264
    %1168 = vmatpush1.bf16.msra.mxu0 %v263
    %1169 = vmatprep.subr.bf16.mxu0 0
    %1170 = vmatpush1.bf16.msra.mxu0 0
    %1171 = vmatprep.subr.bf16.mxu0 0
    %1172 = vmatpush1.bf16.msra.mxu0 0
    %1173 = vmatprep.subr.bf16.mxu0 0
    %1174 = vmatpush1.bf16.msra.mxu0 0
    %1175 = vmatprep.subr.bf16.mxu0 0
    %1176 = vmatpush1.bf16.msra.mxu0 0
    %1177 = vmatprep.subr.bf16.mxu0 0
    %1178 = vmatpush1.bf16.msra.mxu0 0
    %1179 = vmatprep.subr.bf16.mxu0 0
    %1180 = vmatpush1.bf16.msra.mxu0 0
    %1181 = vmatprep.subr.bf16.mxu0 0
    %1182 = vmatpush1.bf16.msra.mxu0 0
    %1183 = vmatprep.subr.bf16.mxu0 0
    %1184 = vmatpush1.bf16.msra.mxu0 0
    %1185 = vmatprep.mubr.bf16.mxu0 0
    %1186 = vmatmul.mubr.bf16.gmra.mrb[0].mxu0 %v1152
    %v1187 = vpop.f32.mrb[0].mxu0
    %v1188 = vadd.f32 0.0, %v1187
    %v1189 = vpop.f32.mrb[0].mxu0
    %v1190 = vadd.f32 0.0, %v1189
    %v1191 = vpop.f32.mrb[0].mxu0
    %v1192 = vpop.f32.mrb[0].mxu0
    %1193 = vdwg.mxu0
    %1194 = vmatprep.subr.bf16.mxu0 %v238
    %1195 = vmatpush1.bf16.msra.mxu0 %v237
    %1196 = vmatprep.subr.bf16.mxu0 %v242
    %1197 = vmatpush1.bf16.msra.mxu0 %v241
    %1198 = vmatprep.subr.bf16.mxu0 %v246
    %1199 = vmatpush1.bf16.msra.mxu0 %v245
    %1200 = vmatprep.subr.bf16.mxu0 %v250
    %1201 = vmatpush1.bf16.msra.mxu0 %v249
    %1202 = vmatprep.subr.bf16.mxu0 %v254
    %1203 = vmatpush1.bf16.msra.mxu0 %v253
    %1204 = vmatprep.subr.bf16.mxu0 %v258
    %1205 = vmatpush1.bf16.msra.mxu0 %v257
    %1206 = vmatprep.subr.bf16.mxu0 %v262
    %1207 = vmatpush1.bf16.msra.mxu0 %v261
    %1208 = vmatprep.subr.bf16.mxu0 %v266
    %1209 = vmatpush1.bf16.msra.mxu0 %v265
    %1210 = vmatprep.subr.bf16.mxu0 0
    %1211 = vmatpush1.bf16.msra.mxu0 0
    %1212 = vmatprep.subr.bf16.mxu0 0
    %1213 = vmatpush1.bf16.msra.mxu0 0
    %1214 = vmatprep.subr.bf16.mxu0 0
    %1215 = vmatpush1.bf16.msra.mxu0 0
    %1216 = vmatprep.subr.bf16.mxu0 0
    %1217 = vmatpush1.bf16.msra.mxu0 0
    %1218 = vmatprep.subr.bf16.mxu0 0
    %1219 = vmatpush1.bf16.msra.mxu0 0
    %1220 = vmatprep.subr.bf16.mxu0 0
    %1221 = vmatpush1.bf16.msra.mxu0 0
    %1222 = vmatprep.subr.bf16.mxu0 0
    %1223 = vmatpush1.bf16.msra.mxu0 0
    %1224 = vmatprep.subr.bf16.mxu0 0
    %1225 = vmatpush1.bf16.msra.mxu0 0
    %1226 = vmatprep.mubr.bf16.mxu0 0
    %1227 = vmatmul.mubr.bf16.gmra.mrb[0].mxu0 %v1152
    %v1228 = vpop.f32.mrb[0].mxu0
    %v1229 = vadd.f32 0.0, %v1228
    %v1230 = vpop.f32.mrb[0].mxu0
    %v1231 = vadd.f32 0.0, %v1230
    %v1232 = vpop.f32.mrb[0].mxu0
    %v1233 = vpop.f32.mrb[0].mxu0
    %1234 = vdwg.mxu0
    %v1235 = vadd.f32 %v1148, %v1188
    %v1236 = vadd.f32 %v1149, %v1190
    %v1237 = vadd.f32 %v1150, %v1229
    %v1238 = vadd.f32 %v1151, %v1231
    %v1239 = vxor.u32 %v1235, 2147483648
    %v1240 = vmul.f32 %v1239, 1.442695
    %v1241 = vpow.pop %v1240
    %v1242 = vadd.f32 %v1241, 1.0
    %v1243 = vrcp.pop %v1242
    %v1244 = vmul.f32 1.0, %v1243
    %v1245 = vxor.u32 %v1236, 2147483648
    %v1246 = vmul.f32 %v1245, 1.442695
    %v1247 = vpow.pop %v1246
    %v1248 = vadd.f32 %v1247, 1.0
    %v1249 = vrcp.pop %v1248
    %v1250 = vmul.f32 1.0, %v1249
    %v1251 = vtanh.pop %v1237
    %v1252 = vxor.u32 %v1238, 2147483648
    %v1253 = vmul.f32 %v1252, 1.442695
    %v1254 = vpow.pop %v1253
    %v1255 = vadd.f32 %v1254, 1.0
    %v1256 = vrcp.pop %v1255
    %v1257 = vmul.f32 1.0, %v1256
    %v1258 = vmul.f32 %v1250, %v1138
    %v1259 = vmul.f32 %v1244, %v1251
    %v1260 = vadd.f32 %v1258, %v1259
    %v1261 = vtanh.pop %v1260
    %v1262 = vmul.f32 %v1257, %v1261
    %v1263 = vpack.c.bf16 %v1262, %v1262
    %v1264 = vld [vmem:[#allocation8] sm:$0xf]
    %v1265 = vld [vmem:[#allocation8 + $0x4] sm:$0xf]
    %v1266 = vld [vmem:[#allocation8 + $0x8] sm:$0xf]
    %v1267 = vld [vmem:[#allocation8 + $0xc] sm:$0xf]
    %v1268 = vld [vmem:[#allocation8 + $0x10] sm:$0xf]
    %v1269 = vld [vmem:[#allocation8 + $0x14] sm:$0xf]
    %v1270 = vld [vmem:[#allocation8 + $0x18] sm:$0xf]
    %v1271 = vld [vmem:[#allocation8 + $0x1c] sm:$0xf]
    %v1272 = vld [vmem:[#allocation8 + $0x20] sm:$0xf]
    %v1273 = vld [vmem:[#allocation8 + $0x24] sm:$0xf]
    %v1274 = vld [vmem:[#allocation8 + $0x28] sm:$0xf]
    %v1275 = vld [vmem:[#allocation8 + $0x2c] sm:$0xf]
    %v1276 = vld [vmem:[#allocation8 + $0x30] sm:$0xf]
    %v1277 = vld [vmem:[#allocation8 + $0x34] sm:$0xf]
    %v1278 = vld [vmem:[#allocation8 + $0x38] sm:$0xf]
    %v1279 = vld [vmem:[#allocation8 + $0x3c] sm:$0xf]
    %v1280 = vld [vmem:[%s4] sm:$0x1]
    %v1282 = vlaneseq
    %v1283 = vshrl.u32 %v1282, 7
    %v1284 = vsub.s32 0, %v1283
    %v1285 = vrot.slane %v1280, %v1284
    %v1303 = vunpack.c.l.b16 %v1264
    %v1304 = vunpack.c.l.b16 %v1265
    %v1305 = vunpack.c.l.b16 %v1266
    %v1306 = vunpack.c.l.b16 %v1267
    %v1307 = vunpack.c.l.b16 %v1268
    %v1308 = vunpack.c.l.b16 %v1269
    %v1309 = vunpack.c.l.b16 %v1270
    %v1310 = vunpack.c.l.b16 %v1271
    %v1311 = vunpack.c.l.b16 %v1272
    %v1312 = vunpack.c.l.b16 %v1273
    %v1313 = vunpack.c.l.b16 %v1274
    %v1314 = vunpack.c.l.b16 %v1275
    %v1315 = vunpack.c.l.b16 %v1276
    %v1316 = vunpack.c.l.b16 %v1277
    %v1317 = vunpack.c.l.b16 %v1278
    %v1318 = vunpack.c.l.b16 %v1279
    %v1319 = vpack.c.b16 %v1304, %v1303
    %v1320 = vpack.c.b16 %v1306, %v1305
    %v1321 = vpack.c.b16 %v1308, %v1307
    %v1322 = vpack.c.b16 %v1310, %v1309
    %v1323 = vpack.c.b16 %v1312, %v1311
    %v1324 = vpack.c.b16 %v1314, %v1313
    %v1325 = vpack.c.b16 %v1316, %v1315
    %v1326 = vpack.c.b16 %v1318, %v1317
    %1335 = vmatprep.subr.bf16.mxu0 0
    %1336 = vmatpush1.bf16.msra.mxu0 %v1319
    %1337 = vmatprep.subr.bf16.mxu0 0
    %1338 = vmatpush1.bf16.msra.mxu0 %v1320
    %1339 = vmatprep.subr.bf16.mxu0 0
    %1340 = vmatpush1.bf16.msra.mxu0 %v1321
    %1341 = vmatprep.subr.bf16.mxu0 0
    %1342 = vmatpush1.bf16.msra.mxu0 %v1322
    %1343 = vmatprep.subr.bf16.mxu0 0
    %1344 = vmatpush1.bf16.msra.mxu0 %v1323
    %1345 = vmatprep.subr.bf16.mxu0 0
    %1346 = vmatpush1.bf16.msra.mxu0 %v1324
    %1347 = vmatprep.subr.bf16.mxu0 0
    %1348 = vmatpush1.bf16.msra.mxu0 %v1325
    %1349 = vmatprep.subr.bf16.mxu0 0
    %1350 = vmatpush1.bf16.msra.mxu0 %v1326
    %1351 = vmatprep.subr.bf16.mxu0 0
    %1352 = vmatpush1.bf16.msra.mxu0 0
    %1353 = vmatprep.subr.bf16.mxu0 0
    %1354 = vmatpush1.bf16.msra.mxu0 0
    %1355 = vmatprep.subr.bf16.mxu0 0
    %1356 = vmatpush1.bf16.msra.mxu0 0
    %1357 = vmatprep.subr.bf16.mxu0 0
    %1358 = vmatpush1.bf16.msra.mxu0 0
    %1359 = vmatprep.subr.bf16.mxu0 0
    %1360 = vmatpush1.bf16.msra.mxu0 0
    %1361 = vmatprep.subr.bf16.mxu0 0
    %1362 = vmatpush1.bf16.msra.mxu0 0
    %1363 = vmatprep.subr.bf16.mxu0 0
    %1364 = vmatpush1.bf16.msra.mxu0 0
    %1365 = vmatprep.subr.bf16.mxu0 0
    %1366 = vmatpush1.bf16.msra.mxu0 0
    %1367 = vmatprep.mubr.bf16.mxu0 0
    %1368 = vmatmul.mubr.bf16.gmra.mrb[0].mxu0 %v1263
    %v1369 = vpop.f32.mrb[0].mxu0
    %v1370 = vadd.f32 %v1285, %v1369
    %v1371 = vpop.f32.mrb[0].mxu0
    %v1372 = vpop.f32.mrb[0].mxu0
    %v1373 = vpop.f32.mrb[0].mxu0
    %1374 = vdwg.mxu0
    %1375 = vst [vmem:[#allocation10] sm:$0xff] %v1370
    // Predicated region
    $region38: #{tpu_custom_call.1} parent=1 // pred_check
      _
    $region39: #{tpu_custom_call.1} parent=1 // pred_check_branch
      %1377 = sbr.rel (0) target = $region41
    $region40: #{tpu_custom_call.1} parent=1 // pred_region
      %s1379 = ssub.s32 128, 128
      %1380 = vsyncadd [#allocation4], %s1379
      %s1382 = sshll.u32 [#allocation10], 4
      %s1383 = int_to_ptr.vmem [resolvable:$true] %s1382
      %1385 = dma.vmem_to_hbm [thread:$0]  %s1383, 128, %s5, [#allocation4]
    $region41: #{tpu_custom_call.1} parent=1 // pred_fallthru
      _
    // Predicated region
    $region42: #{tpu_custom_call.1} parent=1 // pred_check
      _
    $region43: #{tpu_custom_call.1} parent=1 // pred_check_branch
      %1387 = sbr.rel (0) target = $region45
    $region44: #{tpu_custom_call.1} parent=1 // pred_region
      %1388 = dma.done [#allocation4], 128
    $region45: #{tpu_custom_call.1} parent=1 // pred_fallthru
      _
    %1389 = vsyncpa [#allocation3], 1
    %1390 = vsyncpa [#allocation6], 1
    %1391 = vsyncpa [#allocation9], 1
    %1392 = vsyncpa [#allocation4], 1

</llo_original>
